<compile_context>
chip_gen: v7x
topology: tpu7x:2x2x1
jax: 0.10.0
libtpu: 0.0.40
codegen_flags: <defaults>
</compile_context>

<pallas_src>
import jax
import jax.numpy as jnp
from jax.experimental import pallas as pl
from jax.experimental.pallas import tpu as pltpu


def decoder_kernel(z_ref, w3_ref, b3_ref, w2_ref, b2_ref, w1_ref, b1_ref, out_ref):
    # fc3 + ReLU   (bf16 MXU operands, f32 accumulation, f32 elementwise)
    z = z_ref[...].astype(jnp.bfloat16)
    h = jnp.dot(z, w3_ref[...], preferred_element_type=jnp.float32) + b3_ref[...]
    h = jnp.maximum(h, 0.0)
    # fc2 + ReLU
    h = jnp.dot(h.astype(jnp.bfloat16), w2_ref[...],
                preferred_element_type=jnp.float32) + b2_ref[...]
    h = jnp.maximum(h, 0.0)
    # fc1 (no activation)
    out = jnp.dot(h.astype(jnp.bfloat16), w1_ref[...],
                  preferred_element_type=jnp.float32) + b1_ref[...]
    out_ref[...] = out.astype(out_ref.dtype)


def _grid_invariant_spec(shape, single_buffer):
    """BlockSpec for an operand identical on every grid step (weights/biases)."""
    index_map = lambda i: (0, 0)
    if single_buffer:
        buffered = getattr(pl, "Buffered", None)
        if buffered is not None:
            try:
                return pl.BlockSpec(shape, index_map, pipeline_mode=buffered(1))
            except Exception:
                pass  # older JAX without pipeline_mode on BlockSpec
    return pl.BlockSpec(shape, index_map)


def _build_decoder_call(tm, grid, n_latent, n_dims, n_dims_out, m_pad, out_dtype,
                        single_buffer_weights):
    in_specs = [
        pl.BlockSpec((tm, n_latent), lambda i: (i, 0)),                      # z tile
        _grid_invariant_spec((n_latent, n_dims), single_buffer_weights),     # W3^T
        _grid_invariant_spec((1, n_dims), single_buffer_weights),            # b3
        _grid_invariant_spec((n_dims, n_dims), single_buffer_weights),       # W2^T
        _grid_invariant_spec((1, n_dims), single_buffer_weights),            # b2
        _grid_invariant_spec((n_dims, n_dims_out), single_buffer_weights),   # W1^T
        _grid_invariant_spec((1, n_dims_out), single_buffer_weights),        # b1
    ]
    return pl.pallas_call(
        decoder_kernel,
        out_shape=jax.ShapeDtypeStruct((m_pad, n_dims_out), out_dtype),
        grid_spec=pltpu.PrefetchScalarGridSpec(
            num_scalar_prefetch=0,
            grid=grid,
            in_specs=in_specs,
            out_specs=pl.BlockSpec((tm, n_dims_out), lambda i: (i, 0)),
        ),
        compiler_params=pltpu.CompilerParams(
            dimension_semantics=("parallel",),
        ),
    )


def decoder_forward(z, params, channels_out, size_out, *, tm_cap=512):
    """z: (B, repeats, n_latent) -> (B, repeats, channels_out, size_out, size_out)."""
    B, repeats, n_latent = z.shape
    w3, b3, w2, b2, w1, b1 = params
    n_dims = w3.shape[1]
    n_dims_out = w1.shape[1]
    assert n_dims_out == channels_out * size_out * size_out

    M = B * repeats
    z_flat = z.reshape(M, n_latent)

    # Adaptive row tile: fill the MXU M dimension / amortize per-step overhead, capped so
    # the double-buffered f32 output block stays comfortably inside VMEM on v5e/v6e/v7x.
    tm = min(pl.cdiv(M, 8) * 8, tm_cap)
    M_pad = pl.cdiv(M, tm) * tm
    if M_pad != M:
        z_flat = jnp.pad(z_flat, ((0, M_pad - M), (0, 0)))
    grid = (M_pad // tm,)

    # bf16 MXU operands for the weights; biases stay f32 for the f32 bias-add/ReLU path.
    w3c = w3.astype(jnp.bfloat16)
    w2c = w2.astype(jnp.bfloat16)
    w1c = w1.astype(jnp.bfloat16)
    b3c = b3.astype(jnp.float32)
    b2c = b2.astype(jnp.float32)
    b1c = b1.astype(jnp.float32)

    args = (z_flat, w3c, b3c, w2c, b2c, w1c, b1c)
    try:
        call = _build_decoder_call(tm, grid, n_latent, n_dims, n_dims_out, M_pad,
                                   z.dtype, single_buffer_weights=True)
        out_flat = call(*args)
    except Exception:
        # Fallback: default (double-buffered) specs for the grid-invariant operands.
        call = _build_decoder_call(tm, grid, n_latent, n_dims, n_dims_out, M_pad,
                                   z.dtype, single_buffer_weights=False)
        out_flat = call(*args)

    out_flat = out_flat[:M]
    return out_flat.reshape(B, repeats, channels_out, size_out, size_out)


def init_decoder_params(key, n_latent, n_dims, n_dims_out, dtype=jnp.float32):
    """PyTorch nn.Linear default init: U(-1/sqrt(fan_in), 1/sqrt(fan_in)).
    Weights stored transposed: (in_features, out_features)."""
    ks = jax.random.split(key, 6)

    def lin(kw, kb, fan_in, fan_out):
        bound = 1.0 / (fan_in ** 0.5)
        w = jax.random.uniform(kw, (fan_in, fan_out), dtype, -bound, bound)
        b = jax.random.uniform(kb, (1, fan_out), dtype, -bound, bound)
        return w, b

    w3, b3 = lin(ks[0], ks[1], n_latent, n_dims)      # fc3
    w2, b2 = lin(ks[2], ks[3], n_dims, n_dims)        # fc2
    w1, b1 = lin(ks[4], ks[5], n_dims, n_dims_out)    # fc1
    return (w3, b3, w2, b2, w1, b1)


def decoder_ref_f32(z, params):
    """Pure-f32 JAX reference matching the PyTorch forward."""
    w3, b3, w2, b2, w1, b1 = params
    B, R, L = z.shape
    out = z.reshape(-1, L)
    out = jax.nn.relu(out @ w3 + b3)
    out = jax.nn.relu(out @ w2 + b2)
    return out @ w1 + b1


def decoder_ref_bf16(z, params):
    """Reference mirroring the kernel's numerics: bf16 MXU operands, f32 accumulation."""
    w3, b3, w2, b2, w1, b1 = params
    bf = jnp.bfloat16

    def dot(a, b):
        return jnp.dot(a.astype(bf), b.astype(bf), preferred_element_type=jnp.float32)

    B, R, L = z.shape
    out = z.reshape(-1, L)
    out = jax.nn.relu(dot(out, w3) + b3)
    out = jax.nn.relu(dot(out, w2) + b2)
    return dot(out, w1) + b1


if __name__ == "__main__":
    # Small deterministic config consistent with the module's forward.
    batch = 2
    repeats = 8
    n_latent = 32
    n_dims = 64
    channels_out = 4
    size_out = 16
    n_dims_out = channels_out * size_out * size_out  # 1024

    key = jax.random.PRNGKey(0)
    k_z, k_p = jax.random.split(key)
    z = jax.random.normal(k_z, (batch, repeats, n_latent), dtype=jnp.float32)
    params = init_decoder_params(k_p, n_latent, n_dims, n_dims_out)

    out = decoder_forward(z, params, channels_out, size_out)
    out = jax.block_until_ready(out)

    shape5d = (batch, repeats, channels_out, size_out, size_out)
    assert out.shape == shape5d

    # Tight check against a reference that mirrors the kernel's bf16-MXU numerics.
    ref16 = decoder_ref_bf16(z, params).reshape(shape5d)
    assert jnp.allclose(out, ref16, atol=1e-3, rtol=1e-3), "mismatch vs bf16-matched ref"

    # Loose check against the pure-f32 PyTorch-equivalent reference.
    ref32 = decoder_ref_f32(z, params).reshape(shape5d)
    assert jnp.allclose(out, ref32, atol=5e-2, rtol=5e-2), "mismatch vs f32 ref"

    print("KERNEL_OK")
</pallas_src>

<mosaic_0001>
module attributes {stable_mosaic.version = 11 : i64} {
  func.func @decoder_kernel(%arg0: i32, %arg1: memref<16x32xf32, #tpu.memory_space<vmem>>, %arg2: memref<32x64xbf16, #tpu.memory_space<vmem>>, %arg3: memref<1x64xf32, #tpu.memory_space<vmem>>, %arg4: memref<64x64xbf16, #tpu.memory_space<vmem>>, %arg5: memref<1x64xf32, #tpu.memory_space<vmem>>, %arg6: memref<64x1024xbf16, #tpu.memory_space<vmem>>, %arg7: memref<1x1024xf32, #tpu.memory_space<vmem>>, %arg8: memref<16x1024xf32, #tpu.memory_space<vmem>>) attributes {dimension_semantics = [#tpu.dimension_semantics<parallel>], iteration_bounds = array<i64: 1>, scalar_prefetch = 0 : i64, scratch_operands = 0 : i64, tpu.core_type = #tpu.core_type<tc>, window_params = [{transform_indices = @transform_0, window_bounds = array<i64: 16, 32>}, {pipeline_mode = #tpu.pipeline_mode<synchronous>, transform_indices = @transform_1, window_bounds = array<i64: 32, 64>}, {pipeline_mode = #tpu.pipeline_mode<synchronous>, transform_indices = @transform_2, window_bounds = array<i64: 1, 64>}, {pipeline_mode = #tpu.pipeline_mode<synchronous>, transform_indices = @transform_3, window_bounds = array<i64: 64, 64>}, {pipeline_mode = #tpu.pipeline_mode<synchronous>, transform_indices = @transform_4, window_bounds = array<i64: 1, 64>}, {pipeline_mode = #tpu.pipeline_mode<synchronous>, transform_indices = @transform_5, window_bounds = array<i64: 64, 1024>}, {pipeline_mode = #tpu.pipeline_mode<synchronous>, transform_indices = @transform_6, window_bounds = array<i64: 1, 1024>}, {transform_indices = @transform_7, window_bounds = array<i64: 16, 1024>}]} {
    %c0 = arith.constant 0 : index
    %c0_0 = arith.constant 0 : index
    %0 = vector.load %arg1[%c0, %c0_0] : memref<16x32xf32, #tpu.memory_space<vmem>>, vector<16x32xf32>
    %1 = arith.truncf %0 : vector<16x32xf32> to vector<16x32xbf16>
    %c0_1 = arith.constant 0 : index
    %c0_2 = arith.constant 0 : index
    %2 = vector.load %arg2[%c0_1, %c0_2] : memref<32x64xbf16, #tpu.memory_space<vmem>>, vector<32x64xbf16>
    %cst = arith.constant dense<0.000000e+00> : vector<16x64xf32>
    %3 = tpu.matmul %1, %2, %cst {dimension_numbers = #tpu.dot_dimension_numbers<[1], [0], [0], [1], [0, 0, 1, 1], [], []>} : vector<16x32xbf16>, vector<32x64xbf16>, vector<16x64xf32> -> vector<16x64xf32>
    %c0_3 = arith.constant 0 : index
    %c0_4 = arith.constant 0 : index
    %4 = vector.load %arg3[%c0_3, %c0_4] : memref<1x64xf32, #tpu.memory_space<vmem>>, vector<1x64xf32>
    %5 = vector.broadcast %4 : vector<1x64xf32> to vector<16x64xf32>
    %6 = arith.addf %3, %5 : vector<16x64xf32>
    %cst_5 = arith.constant 0.000000e+00 : f32
    %7 = vector.broadcast %cst_5 : f32 to vector<16x64xf32>
    %8 = arith.maximumf %6, %7 : vector<16x64xf32>
    %9 = arith.truncf %8 : vector<16x64xf32> to vector<16x64xbf16>
    %c0_6 = arith.constant 0 : index
    %c0_7 = arith.constant 0 : index
    %10 = vector.load %arg4[%c0_6, %c0_7] : memref<64x64xbf16, #tpu.memory_space<vmem>>, vector<64x64xbf16>
    %cst_8 = arith.constant dense<0.000000e+00> : vector<16x64xf32>
    %11 = tpu.matmul %9, %10, %cst_8 {dimension_numbers = #tpu.dot_dimension_numbers<[1], [0], [0], [1], [0, 0, 1, 1], [], []>} : vector<16x64xbf16>, vector<64x64xbf16>, vector<16x64xf32> -> vector<16x64xf32>
    %c0_9 = arith.constant 0 : index
    %c0_10 = arith.constant 0 : index
    %12 = vector.load %arg5[%c0_9, %c0_10] : memref<1x64xf32, #tpu.memory_space<vmem>>, vector<1x64xf32>
    %13 = vector.broadcast %12 : vector<1x64xf32> to vector<16x64xf32>
    %14 = arith.addf %11, %13 : vector<16x64xf32>
    %cst_11 = arith.constant 0.000000e+00 : f32
    %15 = vector.broadcast %cst_11 : f32 to vector<16x64xf32>
    %16 = arith.maximumf %14, %15 : vector<16x64xf32>
    %17 = arith.truncf %16 : vector<16x64xf32> to vector<16x64xbf16>
    %c0_12 = arith.constant 0 : index
    %c0_13 = arith.constant 0 : index
    %18 = vector.load %arg6[%c0_12, %c0_13] : memref<64x1024xbf16, #tpu.memory_space<vmem>>, vector<64x1024xbf16>
    %cst_14 = arith.constant dense<0.000000e+00> : vector<16x1024xf32>
    %19 = tpu.matmul %17, %18, %cst_14 {dimension_numbers = #tpu.dot_dimension_numbers<[1], [0], [0], [1], [0, 0, 1, 1], [], []>} : vector<16x64xbf16>, vector<64x1024xbf16>, vector<16x1024xf32> -> vector<16x1024xf32>
    %c0_15 = arith.constant 0 : index
    %c0_16 = arith.constant 0 : index
    %20 = vector.load %arg7[%c0_15, %c0_16] : memref<1x1024xf32, #tpu.memory_space<vmem>>, vector<1x1024xf32>
    %21 = vector.broadcast %20 : vector<1x1024xf32> to vector<16x1024xf32>
    %22 = arith.addf %19, %21 : vector<16x1024xf32>
    %c0_17 = arith.constant 0 : index
    %c0_18 = arith.constant 0 : index
    %23 = vector.load %arg8[%c0_17, %c0_18] : memref<16x1024xf32, #tpu.memory_space<vmem>>, vector<16x1024xf32>
    tpu.vector_store %arg8[%c0_17, %c0_18], %22 {strides = array<i32>} : memref<16x1024xf32, #tpu.memory_space<vmem>>, vector<16x1024xf32>,
    return
  }
  func.func @transform_0(%arg0: i32) -> (i32, i32) {
    %c0_i32 = arith.constant 0 : i32
    %c0_i32_0 = arith.constant 0 : i32
    return %arg0, %c0_i32 : i32, i32
  }
  func.func @transform_1(%arg0: i32) -> (i32, i32) {
    %c0_i32 = arith.constant 0 : i32
    %c0_i32_0 = arith.constant 0 : i32
    %c0_i32_1 = arith.constant 0 : i32
    return %c0_i32, %c0_i32_0 : i32, i32
  }
  func.func @transform_2(%arg0: i32) -> (i32, i32) {
    %c0_i32 = arith.constant 0 : i32
    %c0_i32_0 = arith.constant 0 : i32
    %c0_i32_1 = arith.constant 0 : i32
    return %c0_i32, %c0_i32_0 : i32, i32
  }
  func.func @transform_3(%arg0: i32) -> (i32, i32) {
    %c0_i32 = arith.constant 0 : i32
    %c0_i32_0 = arith.constant 0 : i32
    %c0_i32_1 = arith.constant 0 : i32
    return %c0_i32, %c0_i32_0 : i32, i32
  }
  func.func @transform_4(%arg0: i32) -> (i32, i32) {
    %c0_i32 = arith.constant 0 : i32
    %c0_i32_0 = arith.constant 0 : i32
    %c0_i32_1 = arith.constant 0 : i32
    return %c0_i32, %c0_i32_0 : i32, i32
  }
  func.func @transform_5(%arg0: i32) -> (i32, i32) {
    %c0_i32 = arith.constant 0 : i32
    %c0_i32_0 = arith.constant 0 : i32
    %c0_i32_1 = arith.constant 0 : i32
    return %c0_i32, %c0_i32_0 : i32, i32
  }
  func.func @transform_6(%arg0: i32) -> (i32, i32) {
    %c0_i32 = arith.constant 0 : i32
    %c0_i32_0 = arith.constant 0 : i32
    %c0_i32_1 = arith.constant 0 : i32
    return %c0_i32, %c0_i32_0 : i32, i32
  }
  func.func @transform_7(%arg0: i32) -> (i32, i32) {
    %c0_i32 = arith.constant 0 : i32
    %c0_i32_0 = arith.constant 0 : i32
    return %arg0, %c0_i32 : i32, i32
  }
}

module attributes {stable_mosaic.version = 11 : i64} {
  func.func @decoder_kernel(%arg0: i32, %arg1: memref<16x32xf32, #tpu.memory_space<vmem>>, %arg2: memref<32x64xbf16, #tpu.memory_space<vmem>>, %arg3: memref<1x64xf32, #tpu.memory_space<vmem>>, %arg4: memref<64x64xbf16, #tpu.memory_space<vmem>>, %arg5: memref<1x64xf32, #tpu.memory_space<vmem>>, %arg6: memref<64x1024xbf16, #tpu.memory_space<vmem>>, %arg7: memref<1x1024xf32, #tpu.memory_space<vmem>>, %arg8: memref<16x1024xf32, #tpu.memory_space<vmem>>) attributes {dimension_semantics = [#tpu.dimension_semantics<parallel>], iteration_bounds = array<i64: 1>, scalar_prefetch = 0 : i64, scratch_operands = 0 : i64, tpu.core_type = #tpu.core_type<tc>, window_params = [{transform_indices = @transform_0, window_bounds = array<i64: 16, 32>}, {pipeline_mode = #tpu.pipeline_mode<synchronous>, transform_indices = @transform_1, window_bounds = array<i64: 32, 64>}, {pipeline_mode = #tpu.pipeline_mode<synchronous>, transform_indices = @transform_2, window_bounds = array<i64: 1, 64>}, {pipeline_mode = #tpu.pipeline_mode<synchronous>, transform_indices = @transform_3, window_bounds = array<i64: 64, 64>}, {pipeline_mode = #tpu.pipeline_mode<synchronous>, transform_indices = @transform_4, window_bounds = array<i64: 1, 64>}, {pipeline_mode = #tpu.pipeline_mode<synchronous>, transform_indices = @transform_5, window_bounds = array<i64: 64, 1024>}, {pipeline_mode = #tpu.pipeline_mode<synchronous>, transform_indices = @transform_6, window_bounds = array<i64: 1, 1024>}, {transform_indices = @transform_7, window_bounds = array<i64: 16, 1024>}]} {
    %c0 = arith.constant 0 : index
    %c0_0 = arith.constant 0 : index
    %0 = vector.load %arg1[%c0, %c0_0] : memref<16x32xf32, #tpu.memory_space<vmem>>, vector<16x32xf32>
    %1 = arith.truncf %0 : vector<16x32xf32> to vector<16x32xbf16>
    %c0_1 = arith.constant 0 : index
    %c0_2 = arith.constant 0 : index
    %2 = vector.load %arg2[%c0_1, %c0_2] : memref<32x64xbf16, #tpu.memory_space<vmem>>, vector<32x64xbf16>
    %cst = arith.constant dense<0.000000e+00> : vector<16x64xf32>
    %3 = tpu.matmul %1, %2, %cst {dimension_numbers = #tpu.dot_dimension_numbers<[1], [0], [0], [1], [0, 0, 1, 1], [], []>} : vector<16x32xbf16>, vector<32x64xbf16>, vector<16x64xf32> -> vector<16x64xf32>
    %c0_3 = arith.constant 0 : index
    %c0_4 = arith.constant 0 : index
    %4 = vector.load %arg3[%c0_3, %c0_4] : memref<1x64xf32, #tpu.memory_space<vmem>>, vector<1x64xf32>
    %5 = vector.broadcast %4 : vector<1x64xf32> to vector<16x64xf32>
    %6 = arith.addf %3, %5 : vector<16x64xf32>
    %cst_5 = arith.constant 0.000000e+00 : f32
    %7 = vector.broadcast %cst_5 : f32 to vector<16x64xf32>
    %8 = arith.maximumf %6, %7 : vector<16x64xf32>
    %9 = arith.truncf %8 : vector<16x64xf32> to vector<16x64xbf16>
    %c0_6 = arith.constant 0 : index
    %c0_7 = arith.constant 0 : index
    %10 = vector.load %arg4[%c0_6, %c0_7] : memref<64x64xbf16, #tpu.memory_space<vmem>>, vector<64x64xbf16>
    %cst_8 = arith.constant dense<0.000000e+00> : vector<16x64xf32>
    %11 = tpu.matmul %9, %10, %cst_8 {dimension_numbers = #tpu.dot_dimension_numbers<[1], [0], [0], [1], [0, 0, 1, 1], [], []>} : vector<16x64xbf16>, vector<64x64xbf16>, vector<16x64xf32> -> vector<16x64xf32>
    %c0_9 = arith.constant 0 : index
    %c0_10 = arith.constant 0 : index
    %12 = vector.load %arg5[%c0_9, %c0_10] : memref<1x64xf32, #tpu.memory_space<vmem>>, vector<1x64xf32>
    %13 = vector.broadcast %12 : vector<1x64xf32> to vector<16x64xf32>
    %14 = arith.addf %11, %13 : vector<16x64xf32>
    %cst_11 = arith.constant 0.000000e+00 : f32
    %15 = vector.broadcast %cst_11 : f32 to vector<16x64xf32>
    %16 = arith.maximumf %14, %15 : vector<16x64xf32>
    %17 = arith.truncf %16 : vector<16x64xf32> to vector<16x64xbf16>
    %c0_12 = arith.constant 0 : index
    %c0_13 = arith.constant 0 : index
    %18 = vector.load %arg6[%c0_12, %c0_13] : memref<64x1024xbf16, #tpu.memory_space<vmem>>, vector<64x1024xbf16>
    %cst_14 = arith.constant dense<0.000000e+00> : vector<16x1024xf32>
    %19 = tpu.matmul %17, %18, %cst_14 {dimension_numbers = #tpu.dot_dimension_numbers<[1], [0], [0], [1], [0, 0, 1, 1], [], []>} : vector<16x64xbf16>, vector<64x1024xbf16>, vector<16x1024xf32> -> vector<16x1024xf32>
    %c0_15 = arith.constant 0 : index
    %c0_16 = arith.constant 0 : index
    %20 = vector.load %arg7[%c0_15, %c0_16] : memref<1x1024xf32, #tpu.memory_space<vmem>>, vector<1x1024xf32>
    %21 = vector.broadcast %20 : vector<1x1024xf32> to vector<16x1024xf32>
    %22 = arith.addf %19, %21 : vector<16x1024xf32>
    %c0_17 = arith.constant 0 : index
    %c0_18 = arith.constant 0 : index
    %23 = vector.load %arg8[%c0_17, %c0_18] : memref<16x1024xf32, #tpu.memory_space<vmem>>, vector<16x1024xf32>
    tpu.vector_store %arg8[%c0_17, %c0_18], %22 {strides = array<i32>} : memref<16x1024xf32, #tpu.memory_space<vmem>>, vector<16x1024xf32>,
    return
  }
  func.func @transform_0(%arg0: i32) -> (i32, i32) {
    %c0_i32 = arith.constant 0 : i32
    %c0_i32_0 = arith.constant 0 : i32
    return %arg0, %c0_i32 : i32, i32
  }
  func.func @transform_1(%arg0: i32) -> (i32, i32) {
    %c0_i32 = arith.constant 0 : i32
    %c0_i32_0 = arith.constant 0 : i32
    %c0_i32_1 = arith.constant 0 : i32
    return %c0_i32, %c0_i32_0 : i32, i32
  }
  func.func @transform_2(%arg0: i32) -> (i32, i32) {
    %c0_i32 = arith.constant 0 : i32
    %c0_i32_0 = arith.constant 0 : i32
    %c0_i32_1 = arith.constant 0 : i32
    return %c0_i32, %c0_i32_0 : i32, i32
  }
  func.func @transform_3(%arg0: i32) -> (i32, i32) {
    %c0_i32 = arith.constant 0 : i32
    %c0_i32_0 = arith.constant 0 : i32
    %c0_i32_1 = arith.constant 0 : i32
    return %c0_i32, %c0_i32_0 : i32, i32
  }
  func.func @transform_4(%arg0: i32) -> (i32, i32) {
    %c0_i32 = arith.constant 0 : i32
    %c0_i32_0 = arith.constant 0 : i32
    %c0_i32_1 = arith.constant 0 : i32
    return %c0_i32, %c0_i32_0 : i32, i32
  }
  func.func @transform_5(%arg0: i32) -> (i32, i32) {
    %c0_i32 = arith.constant 0 : i32
    %c0_i32_0 = arith.constant 0 : i32
    %c0_i32_1 = arith.constant 0 : i32
    return %c0_i32, %c0_i32_0 : i32, i32
  }
  func.func @transform_6(%arg0: i32) -> (i32, i32) {
    %c0_i32 = arith.constant 0 : i32
    %c0_i32_0 = arith.constant 0 : i32
    %c0_i32_1 = arith.constant 0 : i32
    return %c0_i32, %c0_i32_0 : i32, i32
  }
  func.func @transform_7(%arg0: i32) -> (i32, i32) {
    %c0_i32 = arith.constant 0 : i32
    %c0_i32_0 = arith.constant 0 : i32
    return %arg0, %c0_i32 : i32, i32
  }
}

</mosaic_0001>

<llo_original>
// kernel: tpu_custom_call.1
$region0: #{tpu_custom_call.1}
  #allocation0 [shape = 'u32[]', space=smem, size = 0x4, offset = 0x4, fixed_abs, tag = 'smem constant byte address 0x4 - core index']
  #allocation1 [shape = 'u32[144,128]{1,0:T(1,128)}', space=vmem, size = 0x12000, scoped, tag = 'internal scratch']
  %s0 = inlined_call_operand.hbm [shape: f32[16,32], index: 0, kind: input, shape index: {}]
  %s1 = inlined_call_operand.hbm [shape: bf16[32,64], index: 1, kind: input, shape index: {}]
  %s2 = inlined_call_operand.vmem [shape: f32[1,64], index: 2, kind: input, shape index: {}]
  %s3 = inlined_call_operand.hbm [shape: bf16[64,64], index: 3, kind: input, shape index: {}]
  %s4 = inlined_call_operand.vmem [shape: f32[1,64], index: 4, kind: input, shape index: {}]
  %s5 = inlined_call_operand.hbm [shape: bf16[64,1024], index: 5, kind: input, shape index: {}]
  %s6 = inlined_call_operand.vmem [shape: f32[1,1024], index: 6, kind: input, shape index: {}]
  %s7 = inlined_call_operand.hbm [shape: f32[16,1024], index: 7, kind: output, shape index: {}]
  %s8 = sld [smem:[#allocation0]]
  $region54: #{tpu_custom_call.1} parent=0
    _
  %s10 = ssub.s32 1, %s8
  %s11 = scalar_select 0, %s10, %s8
  $region1: #{tpu_custom_call.1} parent=0
    #allocation2 [shape = 'u8[8192]{0}', space=vmem, size = 0x2000, scoped, tag = 'input window, operand 0, single buffered']
    #allocation3 [shape = 's32[1]{0}', space=sflag, size = 0x4, scoped, tag = 'scoped memory for tpu_custom_call.1']
    #allocation4 [shape = 's32[1]{0}', space=sflag, size = 0x4, scoped, tag = 'scoped memory for tpu_custom_call.1']
    #allocation5 [shape = 'u8[8192]{0}', space=vmem, size = 0x2000, scoped, tag = 'input window, operand 1, single buffered']
    #allocation6 [shape = 's32[1]{0}', space=sflag, size = 0x4, scoped, tag = 'scoped memory for tpu_custom_call.1']
    #allocation7 [shape = 'u8[16384]{0}', space=vmem, size = 0x4000, scoped, tag = 'input window, operand 3, single buffered']
    #allocation8 [shape = 'u8[131072]{0}', space=vmem, size = 0x20000, scoped, tag = 'input window, operand 5, single buffered']
    #allocation9 [shape = 's32[1]{0}', space=sflag, size = 0x4, scoped, tag = 'scoped memory for tpu_custom_call.1']
    #allocation10 [shape = 'u8[65536]{0}', space=vmem, size = 0x10000, scoped, tag = 'output window, operand 0, single buffered']
    %12 = vsyncpa [#allocation3], 0
    %13 = vsyncpa [#allocation6], 0
    %14 = vsyncpa [#allocation9], 0
    %15 = vsyncpa [#allocation4], 0
    // Predicated region
    $region2: #{tpu_custom_call.1} parent=1 // pred_check
      _
    $region3: #{tpu_custom_call.1} parent=1 // pred_check_branch
      %17 = sbr.rel (0) target = $region5
    $region4: #{tpu_custom_call.1} parent=1 // pred_region
      %s19 = ssub.s32 256, 256
      %20 = vsyncadd [#allocation3], %s19
      %s21 = sshll.u32 [#allocation2], 4
      %s22 = int_to_ptr.vmem [resolvable:$true] %s21
      %27 = dma.hbm_to_vmem [thread:$0]  %s0, 256, %s22, [#allocation3], 128, 128, 8
    $region5: #{tpu_custom_call.1} parent=1 // pred_fallthru
      _
    // Predicated region
    $region6: #{tpu_custom_call.1} parent=1 // pred_check
      _
    $region7: #{tpu_custom_call.1} parent=1 // pred_check_branch
      %29 = sbr.rel (0) target = $region9
    $region8: #{tpu_custom_call.1} parent=1 // pred_region
      %s31 = ssub.s32 256, 256
      %32 = vsyncadd [#allocation6], %s31
      %s33 = sshll.u32 [#allocation5], 4
      %s34 = int_to_ptr.vmem [resolvable:$true] %s33
      %39 = dma.hbm_to_vmem [thread:$0]  %s1, 256, %s34, [#allocation6], 64, 64, 4
    $region9: #{tpu_custom_call.1} parent=1 // pred_fallthru
      _
    // Predicated region
    $region10: #{tpu_custom_call.1} parent=1 // pred_check
      _
    $region11: #{tpu_custom_call.1} parent=1 // pred_check_branch
      %41 = sbr.rel (0) target = $region13
    $region12: #{tpu_custom_call.1} parent=1 // pred_region
      _
    $region13: #{tpu_custom_call.1} parent=1 // pred_fallthru
      _
    // Predicated region
    $region14: #{tpu_custom_call.1} parent=1 // pred_check
      _
    $region15: #{tpu_custom_call.1} parent=1 // pred_check_branch
      %43 = sbr.rel (0) target = $region17
    $region16: #{tpu_custom_call.1} parent=1 // pred_region
      %s45 = ssub.s32 512, 512
      %46 = vsyncadd [#allocation6], %s45
      %s47 = sshll.u32 [#allocation7], 4
      %s48 = int_to_ptr.vmem [resolvable:$true] %s47
      %53 = dma.hbm_to_vmem [thread:$0]  %s3, 512, %s48, [#allocation6], 64, 64, 4
    $region17: #{tpu_custom_call.1} parent=1 // pred_fallthru
      _
    // Predicated region
    $region18: #{tpu_custom_call.1} parent=1 // pred_check
      _
    $region19: #{tpu_custom_call.1} parent=1 // pred_check_branch
      %55 = sbr.rel (0) target = $region21
    $region20: #{tpu_custom_call.1} parent=1 // pred_region
      _
    $region21: #{tpu_custom_call.1} parent=1 // pred_fallthru
      _
    // Predicated region
    $region22: #{tpu_custom_call.1} parent=1 // pred_check
      _
    $region23: #{tpu_custom_call.1} parent=1 // pred_check_branch
      %57 = sbr.rel (0) target = $region25
    $region24: #{tpu_custom_call.1} parent=1 // pred_region
      %s59 = ssub.s32 4096, 4096
      %60 = vsyncadd [#allocation9], %s59
      %s61 = sshll.u32 [#allocation8], 4
      %s62 = int_to_ptr.vmem [resolvable:$true] %s61
      %67 = dma.hbm_to_vmem [thread:$0]  %s5, 4096, %s62, [#allocation9], 512, 512, 32
    $region25: #{tpu_custom_call.1} parent=1 // pred_fallthru
      _
    // Predicated region
    $region26: #{tpu_custom_call.1} parent=1 // pred_check
      _
    $region27: #{tpu_custom_call.1} parent=1 // pred_check_branch
      %69 = sbr.rel (0) target = $region29
    $region28: #{tpu_custom_call.1} parent=1 // pred_region
      _
    $region29: #{tpu_custom_call.1} parent=1 // pred_fallthru
      _
    // Predicated region
    $region30: #{tpu_custom_call.1} parent=1 // pred_check
      _
    $region31: #{tpu_custom_call.1} parent=1 // pred_check_branch
      %71 = sbr.rel (0) target = $region33
    $region32: #{tpu_custom_call.1} parent=1 // pred_region
      %72 = dma.done [#allocation3], 256
    $region33: #{tpu_custom_call.1} parent=1 // pred_fallthru
      _
    // Predicated region
    $region34: #{tpu_custom_call.1} parent=1 // pred_check
      _
    $region35: #{tpu_custom_call.1} parent=1 // pred_check_branch
      %74 = sbr.rel (0) target = $region37
    $region36: #{tpu_custom_call.1} parent=1 // pred_region
      %75 = dma.done [#allocation6], 256
    $region37: #{tpu_custom_call.1} parent=1 // pred_fallthru
      _
    // Predicated region
    $region38: #{tpu_custom_call.1} parent=1 // pred_check
      _
    $region39: #{tpu_custom_call.1} parent=1 // pred_check_branch
      %77 = sbr.rel (0) target = $region41
    $region40: #{tpu_custom_call.1} parent=1 // pred_region
      %78 = dma.done [#allocation6], 512
    $region41: #{tpu_custom_call.1} parent=1 // pred_fallthru
      _
    // Predicated region
    $region42: #{tpu_custom_call.1} parent=1 // pred_check
      _
    $region43: #{tpu_custom_call.1} parent=1 // pred_check_branch
      %80 = sbr.rel (0) target = $region45
    $region44: #{tpu_custom_call.1} parent=1 // pred_region
      %81 = dma.done [#allocation9], 4096
    $region45: #{tpu_custom_call.1} parent=1 // pred_fallthru
      _
    %v83 = vld [vmem:[#allocation2] sm:$0xff]
    %v84 = vld [vmem:[#allocation2 + $0x8] sm:$0xff]
    %v85 = vpack.c.bf16 %v84, %v83
    %v86 = vld [vmem:[#allocation5] sm:$0xf]
    %v87 = vld [vmem:[#allocation5 + $0x4] sm:$0xf]
    %v88 = vld [vmem:[#allocation5 + $0x8] sm:$0xf]
    %v89 = vld [vmem:[#allocation5 + $0xc] sm:$0xf]
    %v90 = vld [vmem:[%s2] sm:$0x1]
    %v92 = vlaneseq
    %v93 = vshrl.u32 %v92, 7
    %v94 = vsub.s32 0, %v93
    %v95 = vrot.slane %v90, %v94
    %v101 = vunpack.c.l.b16 %v86
    %v102 = vunpack.c.l.b16 %v87
    %v103 = vunpack.c.l.b16 %v88
    %v104 = vunpack.c.l.b16 %v89
    %v105 = vpack.c.b16 %v102, %v101
    %v106 = vpack.c.b16 %v104, %v103
    %vm109 = vcmask 261120
    %v111 = vsel %vm109, %v85, 0
    %113 = vmatprep.subr.bf16.mxu0 0
    %114 = vmatpush1.bf16.msra.mxu0 %v105
    %115 = vmatprep.subr.bf16.mxu0 0
    %116 = vmatpush1.bf16.msra.mxu0 %v106
    %117 = vmatprep.subr.bf16.mxu0 0
    %118 = vmatpush1.bf16.msra.mxu0 0
    %119 = vmatprep.subr.bf16.mxu0 0
    %120 = vmatpush1.bf16.msra.mxu0 0
    %121 = vmatprep.subr.bf16.mxu0 0
    %122 = vmatpush1.bf16.msra.mxu0 0
    %123 = vmatprep.subr.bf16.mxu0 0
    %124 = vmatpush1.bf16.msra.mxu0 0
    %125 = vmatprep.subr.bf16.mxu0 0
    %126 = vmatpush1.bf16.msra.mxu0 0
    %127 = vmatprep.subr.bf16.mxu0 0
    %128 = vmatpush1.bf16.msra.mxu0 0
    %129 = vmatprep.subr.bf16.mxu0 0
    %130 = vmatpush1.bf16.msra.mxu0 0
    %131 = vmatprep.subr.bf16.mxu0 0
    %132 = vmatpush1.bf16.msra.mxu0 0
    %133 = vmatprep.subr.bf16.mxu0 0
    %134 = vmatpush1.bf16.msra.mxu0 0
    %135 = vmatprep.subr.bf16.mxu0 0
    %136 = vmatpush1.bf16.msra.mxu0 0
    %137 = vmatprep.subr.bf16.mxu0 0
    %138 = vmatpush1.bf16.msra.mxu0 0
    %139 = vmatprep.subr.bf16.mxu0 0
    %140 = vmatpush1.bf16.msra.mxu0 0
    %141 = vmatprep.subr.bf16.mxu0 0
    %142 = vmatpush1.bf16.msra.mxu0 0
    %143 = vmatprep.subr.bf16.mxu0 0
    %144 = vmatpush1.bf16.msra.mxu0 0
    %145 = vmatprep.mubr.bf16.mxu0 0
    %146 = vmatmul.mubr.bf16.gmra.mrb[0].mxu0 %v111
    %v147 = vpop.f32.mrb[0].mxu0
    %v148 = vadd.f32 %v95, %v147
    %v149 = vpop.f32.mrb[0].mxu0
    %v150 = vpop.f32.mrb[0].mxu0
    %v151 = vadd.f32 %v95, %v150
    %v152 = vpop.f32.mrb[0].mxu0
    %153 = vdwg.mxu0
    %v154 = vmax.f32 %v148, 0.0
    %v155 = vmax.f32 %v151, 0.0
    %v156 = vpack.c.bf16 %v155, %v154
    %v157 = vld [vmem:[#allocation7] sm:$0xf]
    %v158 = vld [vmem:[#allocation7 + $0x4] sm:$0xf]
    %v159 = vld [vmem:[#allocation7 + $0x8] sm:$0xf]
    %v160 = vld [vmem:[#allocation7 + $0xc] sm:$0xf]
    %v161 = vld [vmem:[#allocation7 + $0x10] sm:$0xf]
    %v162 = vld [vmem:[#allocation7 + $0x14] sm:$0xf]
    %v163 = vld [vmem:[#allocation7 + $0x18] sm:$0xf]
    %v164 = vld [vmem:[#allocation7 + $0x1c] sm:$0xf]
    %v165 = vld [vmem:[%s4] sm:$0x1]
    %v167 = vlaneseq
    %v168 = vshrl.u32 %v167, 7
    %v169 = vsub.s32 0, %v168
    %v170 = vrot.slane %v165, %v169
    %v180 = vunpack.c.l.b16 %v157
    %v181 = vunpack.c.l.b16 %v158
    %v182 = vunpack.c.l.b16 %v159
    %v183 = vunpack.c.l.b16 %v160
    %v184 = vunpack.c.l.b16 %v161
    %v185 = vunpack.c.l.b16 %v162
    %v186 = vunpack.c.l.b16 %v163
    %v187 = vunpack.c.l.b16 %v164
    %v188 = vpack.c.b16 %v181, %v180
    %v189 = vpack.c.b16 %v183, %v182
    %v190 = vpack.c.b16 %v185, %v184
    %v191 = vpack.c.b16 %v187, %v186
    %vm196 = vcmask 523264
    %v198 = vsel %vm196, %v156, 0
    %200 = vmatprep.subr.bf16.mxu0 0
    %201 = vmatpush1.bf16.msra.mxu0 %v188
    %202 = vmatprep.subr.bf16.mxu0 0
    %203 = vmatpush1.bf16.msra.mxu0 %v189
    %204 = vmatprep.subr.bf16.mxu0 0
    %205 = vmatpush1.bf16.msra.mxu0 %v190
    %206 = vmatprep.subr.bf16.mxu0 0
    %207 = vmatpush1.bf16.msra.mxu0 %v191
    %208 = vmatprep.subr.bf16.mxu0 0
    %209 = vmatpush1.bf16.msra.mxu0 0
    %210 = vmatprep.subr.bf16.mxu0 0
    %211 = vmatpush1.bf16.msra.mxu0 0
    %212 = vmatprep.subr.bf16.mxu0 0
    %213 = vmatpush1.bf16.msra.mxu0 0
    %214 = vmatprep.subr.bf16.mxu0 0
    %215 = vmatpush1.bf16.msra.mxu0 0
    %216 = vmatprep.subr.bf16.mxu0 0
    %217 = vmatpush1.bf16.msra.mxu0 0
    %218 = vmatprep.subr.bf16.mxu0 0
    %219 = vmatpush1.bf16.msra.mxu0 0
    %220 = vmatprep.subr.bf16.mxu0 0
    %221 = vmatpush1.bf16.msra.mxu0 0
    %222 = vmatprep.subr.bf16.mxu0 0
    %223 = vmatpush1.bf16.msra.mxu0 0
    %224 = vmatprep.subr.bf16.mxu0 0
    %225 = vmatpush1.bf16.msra.mxu0 0
    %226 = vmatprep.subr.bf16.mxu0 0
    %227 = vmatpush1.bf16.msra.mxu0 0
    %228 = vmatprep.subr.bf16.mxu0 0
    %229 = vmatpush1.bf16.msra.mxu0 0
    %230 = vmatprep.subr.bf16.mxu0 0
    %231 = vmatpush1.bf16.msra.mxu0 0
    %232 = vmatprep.mubr.bf16.mxu0 0
    %233 = vmatmul.mubr.bf16.gmra.mrb[0].mxu0 %v198
    %v234 = vpop.f32.mrb[0].mxu0
    %v235 = vadd.f32 %v170, %v234
    %v236 = vpop.f32.mrb[0].mxu0
    %v237 = vpop.f32.mrb[0].mxu0
    %v238 = vadd.f32 %v170, %v237
    %v239 = vpop.f32.mrb[0].mxu0
    %240 = vdwg.mxu0
    %v241 = vmax.f32 %v235, 0.0
    %v242 = vmax.f32 %v238, 0.0
    %v243 = vpack.c.bf16 %v242, %v241
    %v244 = vld [vmem:[#allocation8] sm:$0xff]
    %v245 = vld [vmem:[#allocation8 + $0x8] sm:$0xff]
    %v246 = vld [vmem:[#allocation8 + $0x10] sm:$0xff]
    %v247 = vld [vmem:[#allocation8 + $0x18] sm:$0xff]
    %v248 = vld [vmem:[#allocation8 + $0x20] sm:$0xff]
    %v249 = vld [vmem:[#allocation8 + $0x28] sm:$0xff]
    %v250 = vld [vmem:[#allocation8 + $0x30] sm:$0xff]
    %v251 = vld [vmem:[#allocation8 + $0x38] sm:$0xff]
    %v252 = vld [vmem:[#allocation8 + $0x40] sm:$0xff]
    %v253 = vld [vmem:[#allocation8 + $0x48] sm:$0xff]
    %v254 = vld [vmem:[#allocation8 + $0x50] sm:$0xff]
    %v255 = vld [vmem:[#allocation8 + $0x58] sm:$0xff]
    %v256 = vld [vmem:[#allocation8 + $0x60] sm:$0xff]
    %v257 = vld [vmem:[#allocation8 + $0x68] sm:$0xff]
    %v258 = vld [vmem:[#allocation8 + $0x70] sm:$0xff]
    %v259 = vld [vmem:[#allocation8 + $0x78] sm:$0xff]
    %v260 = vld [vmem:[#allocation8 + $0x80] sm:$0xff]
    %v261 = vld [vmem:[#allocation8 + $0x88] sm:$0xff]
    %v262 = vld [vmem:[#allocation8 + $0x90] sm:$0xff]
    %v263 = vld [vmem:[#allocation8 + $0x98] sm:$0xff]
    %v264 = vld [vmem:[#allocation8 + $0xa0] sm:$0xff]
    %v265 = vld [vmem:[#allocation8 + $0xa8] sm:$0xff]
    %v266 = vld [vmem:[#allocation8 + $0xb0] sm:$0xff]
    %v267 = vld [vmem:[#allocation8 + $0xb8] sm:$0xff]
    %v268 = vld [vmem:[#allocation8 + $0xc0] sm:$0xff]
    %v269 = vld [vmem:[#allocation8 + $0xc8] sm:$0xff]
    %v270 = vld [vmem:[#allocation8 + $0xd0] sm:$0xff]
    %v271 = vld [vmem:[#allocation8 + $0xd8] sm:$0xff]
    %v272 = vld [vmem:[#allocation8 + $0xe0] sm:$0xff]
    %v273 = vld [vmem:[#allocation8 + $0xe8] sm:$0xff]
    %v274 = vld [vmem:[#allocation8 + $0xf0] sm:$0xff]
    %v275 = vld [vmem:[#allocation8 + $0xf8] sm:$0xff]
    %v276 = vld [vmem:[%s6] sm:$0xff]
    %v278 = vlaneseq
    %v279 = vshrl.u32 %v278, 7
    %v280 = vsub.s32 0, %v279
    %v281 = vrot.slane %v276, %v280
    %v282 = vlaneseq
    %v283 = vshrl.u32 %v282, 7
    %v284 = vsub.s32 1, %v283
    %v285 = vrot.slane %v276, %v284
    %v286 = vlaneseq
    %v287 = vshrl.u32 %v286, 7
    %v288 = vsub.s32 2, %v287
    %v289 = vrot.slane %v276, %v288
    %v290 = vlaneseq
    %v291 = vshrl.u32 %v290, 7
    %v292 = vsub.s32 3, %v291
    %v293 = vrot.slane %v276, %v292
    %v294 = vlaneseq
    %v295 = vshrl.u32 %v294, 7
    %v296 = vsub.s32 4, %v295
    %v297 = vrot.slane %v276, %v296
    %v298 = vlaneseq
    %v299 = vshrl.u32 %v298, 7
    %v300 = vsub.s32 5, %v299
    %v301 = vrot.slane %v276, %v300
    %v302 = vlaneseq
    %v303 = vshrl.u32 %v302, 7
    %v304 = vsub.s32 6, %v303
    %v305 = vrot.slane %v276, %v304
    %v306 = vlaneseq
    %v307 = vshrl.u32 %v306, 7
    %v308 = vsub.s32 7, %v307
    %v309 = vrot.slane %v276, %v308
    %v350 = vunpack.c.l.b16 %v244
    %v351 = vunpack.c.h.b16 %v244
    %v352 = vunpack.c.l.b16 %v245
    %v353 = vunpack.c.h.b16 %v245
    %v354 = vunpack.c.l.b16 %v246
    %v355 = vunpack.c.h.b16 %v246
    %v356 = vunpack.c.l.b16 %v247
    %v357 = vunpack.c.h.b16 %v247
    %v358 = vunpack.c.l.b16 %v248
    %v359 = vunpack.c.h.b16 %v248
    %v360 = vunpack.c.l.b16 %v249
    %v361 = vunpack.c.h.b16 %v249
    %v362 = vunpack.c.l.b16 %v250
    %v363 = vunpack.c.h.b16 %v250
    %v364 = vunpack.c.l.b16 %v251
    %v365 = vunpack.c.h.b16 %v251
    %v366 = vunpack.c.l.b16 %v252
    %v367 = vunpack.c.h.b16 %v252
    %v368 = vunpack.c.l.b16 %v253
    %v369 = vunpack.c.h.b16 %v253
    %v370 = vunpack.c.l.b16 %v254
    %v371 = vunpack.c.h.b16 %v254
    %v372 = vunpack.c.l.b16 %v255
    %v373 = vunpack.c.h.b16 %v255
    %v374 = vunpack.c.l.b16 %v256
    %v375 = vunpack.c.h.b16 %v256
    %v376 = vunpack.c.l.b16 %v257
    %v377 = vunpack.c.h.b16 %v257
    %v378 = vunpack.c.l.b16 %v258
    %v379 = vunpack.c.h.b16 %v258
    %v380 = vunpack.c.l.b16 %v259
    %v381 = vunpack.c.h.b16 %v259
    %v382 = vunpack.c.l.b16 %v260
    %v383 = vunpack.c.h.b16 %v260
    %v384 = vunpack.c.l.b16 %v261
    %v385 = vunpack.c.h.b16 %v261
    %v386 = vunpack.c.l.b16 %v262
    %v387 = vunpack.c.h.b16 %v262
    %v388 = vunpack.c.l.b16 %v263
    %v389 = vunpack.c.h.b16 %v263
    %v390 = vunpack.c.l.b16 %v264
    %v391 = vunpack.c.h.b16 %v264
    %v392 = vunpack.c.l.b16 %v265
    %v393 = vunpack.c.h.b16 %v265
    %v394 = vunpack.c.l.b16 %v266
    %v395 = vunpack.c.h.b16 %v266
    %v396 = vunpack.c.l.b16 %v267
    %v397 = vunpack.c.h.b16 %v267
    %v398 = vunpack.c.l.b16 %v268
    %v399 = vunpack.c.h.b16 %v268
    %v400 = vunpack.c.l.b16 %v269
    %v401 = vunpack.c.h.b16 %v269
    %v402 = vunpack.c.l.b16 %v270
    %v403 = vunpack.c.h.b16 %v270
    %v404 = vunpack.c.l.b16 %v271
    %v405 = vunpack.c.h.b16 %v271
    %v406 = vunpack.c.l.b16 %v272
    %v407 = vunpack.c.h.b16 %v272
    %v408 = vunpack.c.l.b16 %v273
    %v409 = vunpack.c.h.b16 %v273
    %v410 = vunpack.c.l.b16 %v274
    %v411 = vunpack.c.h.b16 %v274
    %v412 = vunpack.c.l.b16 %v275
    %v413 = vunpack.c.h.b16 %v275
    %v414 = vpack.c.b16 %v358, %v350
    %v415 = vpack.c.b16 %v359, %v351
    %v416 = vpack.c.b16 %v360, %v352
    %v417 = vpack.c.b16 %v361, %v353
    %v418 = vpack.c.b16 %v362, %v354
    %v419 = vpack.c.b16 %v363, %v355
    %v420 = vpack.c.b16 %v364, %v356
    %v421 = vpack.c.b16 %v365, %v357
    %v422 = vpack.c.b16 %v374, %v366
    %v423 = vpack.c.b16 %v375, %v367
    %v424 = vpack.c.b16 %v376, %v368
    %v425 = vpack.c.b16 %v377, %v369
    %v426 = vpack.c.b16 %v378, %v370
    %v427 = vpack.c.b16 %v379, %v371
    %v428 = vpack.c.b16 %v380, %v372
    %v429 = vpack.c.b16 %v381, %v373
    %v430 = vpack.c.b16 %v390, %v382
    %v431 = vpack.c.b16 %v391, %v383
    %v432 = vpack.c.b16 %v392, %v384
    %v433 = vpack.c.b16 %v393, %v385
    %v434 = vpack.c.b16 %v394, %v386
    %v435 = vpack.c.b16 %v395, %v387
    %v436 = vpack.c.b16 %v396, %v388
    %v437 = vpack.c.b16 %v397, %v389
    %v438 = vpack.c.b16 %v406, %v398
    %v439 = vpack.c.b16 %v407, %v399
    %v440 = vpack.c.b16 %v408, %v400
    %v441 = vpack.c.b16 %v409, %v401
    %v442 = vpack.c.b16 %v410, %v402
    %v443 = vpack.c.b16 %v411, %v403
    %v444 = vpack.c.b16 %v412, %v404
    %v445 = vpack.c.b16 %v413, %v405
    %v479 = vsel %vm196, %v243, 0
    %481 = vmatprep.subr.bf16.mxu0 %v415
    %482 = vmatpush1.bf16.msra.mxu0 %v414
    %483 = vmatprep.subr.bf16.mxu0 %v423
    %484 = vmatpush1.bf16.msra.mxu0 %v422
    %485 = vmatprep.subr.bf16.mxu0 %v431
    %486 = vmatpush1.bf16.msra.mxu0 %v430
    %487 = vmatprep.subr.bf16.mxu0 %v439
    %488 = vmatpush1.bf16.msra.mxu0 %v438
    %489 = vmatprep.subr.bf16.mxu0 0
    %490 = vmatpush1.bf16.msra.mxu0 0
    %491 = vmatprep.subr.bf16.mxu0 0
    %492 = vmatpush1.bf16.msra.mxu0 0
    %493 = vmatprep.subr.bf16.mxu0 0
    %494 = vmatpush1.bf16.msra.mxu0 0
    %495 = vmatprep.subr.bf16.mxu0 0
    %496 = vmatpush1.bf16.msra.mxu0 0
    %497 = vmatprep.subr.bf16.mxu0 0
    %498 = vmatpush1.bf16.msra.mxu0 0
    %499 = vmatprep.subr.bf16.mxu0 0
    %500 = vmatpush1.bf16.msra.mxu0 0
    %501 = vmatprep.subr.bf16.mxu0 0
    %502 = vmatpush1.bf16.msra.mxu0 0
    %503 = vmatprep.subr.bf16.mxu0 0
    %504 = vmatpush1.bf16.msra.mxu0 0
    %505 = vmatprep.subr.bf16.mxu0 0
    %506 = vmatpush1.bf16.msra.mxu0 0
    %507 = vmatprep.subr.bf16.mxu0 0
    %508 = vmatpush1.bf16.msra.mxu0 0
    %509 = vmatprep.subr.bf16.mxu0 0
    %510 = vmatpush1.bf16.msra.mxu0 0
    %511 = vmatprep.subr.bf16.mxu0 0
    %512 = vmatpush1.bf16.msra.mxu0 0
    %513 = vmatprep.mubr.bf16.mxu0 0
    %514 = vmatmul.mubr.bf16.gmra.mrb[0].mxu0 %v479
    %v515 = vpop.f32.mrb[0].mxu0
    %v516 = vadd.f32 %v281, %v515
    %v517 = vpop.f32.mrb[0].mxu0
    %v518 = vadd.f32 %v285, %v517
    %v519 = vpop.f32.mrb[0].mxu0
    %v520 = vadd.f32 %v281, %v519
    %v521 = vpop.f32.mrb[0].mxu0
    %v522 = vadd.f32 %v285, %v521
    %523 = vdwg.mxu0
    %524 = vmatprep.subr.bf16.mxu0 %v417
    %525 = vmatpush1.bf16.msra.mxu0 %v416
    %526 = vmatprep.subr.bf16.mxu0 %v425
    %527 = vmatpush1.bf16.msra.mxu0 %v424
    %528 = vmatprep.subr.bf16.mxu0 %v433
    %529 = vmatpush1.bf16.msra.mxu0 %v432
    %530 = vmatprep.subr.bf16.mxu0 %v441
    %531 = vmatpush1.bf16.msra.mxu0 %v440
    %532 = vmatprep.subr.bf16.mxu0 0
    %533 = vmatpush1.bf16.msra.mxu0 0
    %534 = vmatprep.subr.bf16.mxu0 0
    %535 = vmatpush1.bf16.msra.mxu0 0
    %536 = vmatprep.subr.bf16.mxu0 0
    %537 = vmatpush1.bf16.msra.mxu0 0
    %538 = vmatprep.subr.bf16.mxu0 0
    %539 = vmatpush1.bf16.msra.mxu0 0
    %540 = vmatprep.subr.bf16.mxu0 0
    %541 = vmatpush1.bf16.msra.mxu0 0
    %542 = vmatprep.subr.bf16.mxu0 0
    %543 = vmatpush1.bf16.msra.mxu0 0
    %544 = vmatprep.subr.bf16.mxu0 0
    %545 = vmatpush1.bf16.msra.mxu0 0
    %546 = vmatprep.subr.bf16.mxu0 0
    %547 = vmatpush1.bf16.msra.mxu0 0
    %548 = vmatprep.subr.bf16.mxu0 0
    %549 = vmatpush1.bf16.msra.mxu0 0
    %550 = vmatprep.subr.bf16.mxu0 0
    %551 = vmatpush1.bf16.msra.mxu0 0
    %552 = vmatprep.subr.bf16.mxu0 0
    %553 = vmatpush1.bf16.msra.mxu0 0
    %554 = vmatprep.subr.bf16.mxu0 0
    %555 = vmatpush1.bf16.msra.mxu0 0
    %556 = vmatprep.mubr.bf16.mxu0 0
    %557 = vmatmul.mubr.bf16.gmra.mrb[0].mxu0 %v479
    %v558 = vpop.f32.mrb[0].mxu0
    %v559 = vadd.f32 %v289, %v558
    %v560 = vpop.f32.mrb[0].mxu0
    %v561 = vadd.f32 %v293, %v560
    %v562 = vpop.f32.mrb[0].mxu0
    %v563 = vadd.f32 %v289, %v562
    %v564 = vpop.f32.mrb[0].mxu0
    %v565 = vadd.f32 %v293, %v564
    %566 = vdwg.mxu0
    %567 = vmatprep.subr.bf16.mxu0 %v419
    %568 = vmatpush1.bf16.msra.mxu0 %v418
    %569 = vmatprep.subr.bf16.mxu0 %v427
    %570 = vmatpush1.bf16.msra.mxu0 %v426
    %571 = vmatprep.subr.bf16.mxu0 %v435
    %572 = vmatpush1.bf16.msra.mxu0 %v434
    %573 = vmatprep.subr.bf16.mxu0 %v443
    %574 = vmatpush1.bf16.msra.mxu0 %v442
    %575 = vmatprep.subr.bf16.mxu0 0
    %576 = vmatpush1.bf16.msra.mxu0 0
    %577 = vmatprep.subr.bf16.mxu0 0
    %578 = vmatpush1.bf16.msra.mxu0 0
    %579 = vmatprep.subr.bf16.mxu0 0
    %580 = vmatpush1.bf16.msra.mxu0 0
    %581 = vmatprep.subr.bf16.mxu0 0
    %582 = vmatpush1.bf16.msra.mxu0 0
    %583 = vmatprep.subr.bf16.mxu0 0
    %584 = vmatpush1.bf16.msra.mxu0 0
    %585 = vmatprep.subr.bf16.mxu0 0
    %586 = vmatpush1.bf16.msra.mxu0 0
    %587 = vmatprep.subr.bf16.mxu0 0
    %588 = vmatpush1.bf16.msra.mxu0 0
    %589 = vmatprep.subr.bf16.mxu0 0
    %590 = vmatpush1.bf16.msra.mxu0 0
    %591 = vmatprep.subr.bf16.mxu0 0
    %592 = vmatpush1.bf16.msra.mxu0 0
    %593 = vmatprep.subr.bf16.mxu0 0
    %594 = vmatpush1.bf16.msra.mxu0 0
    %595 = vmatprep.subr.bf16.mxu0 0
    %596 = vmatpush1.bf16.msra.mxu0 0
    %597 = vmatprep.subr.bf16.mxu0 0
    %598 = vmatpush1.bf16.msra.mxu0 0
    %599 = vmatprep.mubr.bf16.mxu0 0
    %600 = vmatmul.mubr.bf16.gmra.mrb[0].mxu0 %v479
    %v601 = vpop.f32.mrb[0].mxu0
    %v602 = vadd.f32 %v297, %v601
    %v603 = vpop.f32.mrb[0].mxu0
    %v604 = vadd.f32 %v301, %v603
    %v605 = vpop.f32.mrb[0].mxu0
    %v606 = vadd.f32 %v297, %v605
    %v607 = vpop.f32.mrb[0].mxu0
    %v608 = vadd.f32 %v301, %v607
    %609 = vdwg.mxu0
    %610 = vmatprep.subr.bf16.mxu0 %v421
    %611 = vmatpush1.bf16.msra.mxu0 %v420
    %612 = vmatprep.subr.bf16.mxu0 %v429
    %613 = vmatpush1.bf16.msra.mxu0 %v428
    %614 = vmatprep.subr.bf16.mxu0 %v437
    %615 = vmatpush1.bf16.msra.mxu0 %v436
    %616 = vmatprep.subr.bf16.mxu0 %v445
    %617 = vmatpush1.bf16.msra.mxu0 %v444
    %618 = vmatprep.subr.bf16.mxu0 0
    %619 = vmatpush1.bf16.msra.mxu0 0
    %620 = vmatprep.subr.bf16.mxu0 0
    %621 = vmatpush1.bf16.msra.mxu0 0
    %622 = vmatprep.subr.bf16.mxu0 0
    %623 = vmatpush1.bf16.msra.mxu0 0
    %624 = vmatprep.subr.bf16.mxu0 0
    %625 = vmatpush1.bf16.msra.mxu0 0
    %626 = vmatprep.subr.bf16.mxu0 0
    %627 = vmatpush1.bf16.msra.mxu0 0
    %628 = vmatprep.subr.bf16.mxu0 0
    %629 = vmatpush1.bf16.msra.mxu0 0
    %630 = vmatprep.subr.bf16.mxu0 0
    %631 = vmatpush1.bf16.msra.mxu0 0
    %632 = vmatprep.subr.bf16.mxu0 0
    %633 = vmatpush1.bf16.msra.mxu0 0
    %634 = vmatprep.subr.bf16.mxu0 0
    %635 = vmatpush1.bf16.msra.mxu0 0
    %636 = vmatprep.subr.bf16.mxu0 0
    %637 = vmatpush1.bf16.msra.mxu0 0
    %638 = vmatprep.subr.bf16.mxu0 0
    %639 = vmatpush1.bf16.msra.mxu0 0
    %640 = vmatprep.subr.bf16.mxu0 0
    %641 = vmatpush1.bf16.msra.mxu0 0
    %642 = vmatprep.mubr.bf16.mxu0 0
    %643 = vmatmul.mubr.bf16.gmra.mrb[0].mxu0 %v479
    %v644 = vpop.f32.mrb[0].mxu0
    %v645 = vadd.f32 %v305, %v644
    %v646 = vpop.f32.mrb[0].mxu0
    %v647 = vadd.f32 %v309, %v646
    %v648 = vpop.f32.mrb[0].mxu0
    %v649 = vadd.f32 %v305, %v648
    %v650 = vpop.f32.mrb[0].mxu0
    %v651 = vadd.f32 %v309, %v650
    %652 = vdwg.mxu0
    %653 = vst [vmem:[#allocation10] sm:$0xff] %v516
    %654 = vst [vmem:[#allocation10 + $0x8] sm:$0xff] %v518
    %655 = vst [vmem:[#allocation10 + $0x10] sm:$0xff] %v559
    %656 = vst [vmem:[#allocation10 + $0x18] sm:$0xff] %v561
    %657 = vst [vmem:[#allocation10 + $0x20] sm:$0xff] %v602
    %658 = vst [vmem:[#allocation10 + $0x28] sm:$0xff] %v604
    %659 = vst [vmem:[#allocation10 + $0x30] sm:$0xff] %v645
    %660 = vst [vmem:[#allocation10 + $0x38] sm:$0xff] %v647
    %661 = vst [vmem:[#allocation10 + $0x40] sm:$0xff] %v520
    %662 = vst [vmem:[#allocation10 + $0x48] sm:$0xff] %v522
    %663 = vst [vmem:[#allocation10 + $0x50] sm:$0xff] %v563
    %664 = vst [vmem:[#allocation10 + $0x58] sm:$0xff] %v565
    %665 = vst [vmem:[#allocation10 + $0x60] sm:$0xff] %v606
    %666 = vst [vmem:[#allocation10 + $0x68] sm:$0xff] %v608
    %667 = vst [vmem:[#allocation10 + $0x70] sm:$0xff] %v649
    %668 = vst [vmem:[#allocation10 + $0x78] sm:$0xff] %v651
    // Predicated region
    $region46: #{tpu_custom_call.1} parent=1 // pred_check
      _
    $region47: #{tpu_custom_call.1} parent=1 // pred_check_branch
      %670 = sbr.rel (0) target = $region49
    $region48: #{tpu_custom_call.1} parent=1 // pred_region
      %s672 = ssub.s32 2048, 2048
      %673 = vsyncadd [#allocation4], %s672
      %s674 = sshll.u32 [#allocation10], 4
      %s675 = int_to_ptr.vmem [resolvable:$true] %s674
      %680 = dma.vmem_to_hbm [thread:$0]  %s675, 2048, %s7, [#allocation4], 1024, 1024, 64
    $region49: #{tpu_custom_call.1} parent=1 // pred_fallthru
      _
    // Predicated region
    $region50: #{tpu_custom_call.1} parent=1 // pred_check
      _
    $region51: #{tpu_custom_call.1} parent=1 // pred_check_branch
      %682 = sbr.rel (0) target = $region53
    $region52: #{tpu_custom_call.1} parent=1 // pred_region
      %683 = dma.done [#allocation4], 2048
    $region53: #{tpu_custom_call.1} parent=1 // pred_fallthru
      _
    %684 = vsyncpa [#allocation3], 1
    %685 = vsyncpa [#allocation6], 1
    %686 = vsyncpa [#allocation9], 1
    %687 = vsyncpa [#allocation4], 1

// kernel: tpu_custom_call.1
$region0: #{tpu_custom_call.1}
  #allocation0 [shape = 'u32[]', space=smem, size = 0x4, offset = 0x4, fixed_abs, tag = 'smem constant byte address 0x4 - core index']
  #allocation1 [shape = 'u32[144,128]{1,0:T(1,128)}', space=vmem, size = 0x12000, scoped, tag = 'internal scratch']
  %s0 = inlined_call_operand.hbm [shape: f32[16,32], index: 0, kind: input, shape index: {}]
  %s1 = inlined_call_operand.hbm [shape: bf16[32,64], index: 1, kind: input, shape index: {}]
  %s2 = inlined_call_operand.vmem [shape: f32[1,64], index: 2, kind: input, shape index: {}]
  %s3 = inlined_call_operand.hbm [shape: bf16[64,64], index: 3, kind: input, shape index: {}]
  %s4 = inlined_call_operand.vmem [shape: f32[1,64], index: 4, kind: input, shape index: {}]
  %s5 = inlined_call_operand.hbm [shape: bf16[64,1024], index: 5, kind: input, shape index: {}]
  %s6 = inlined_call_operand.vmem [shape: f32[1,1024], index: 6, kind: input, shape index: {}]
  %s7 = inlined_call_operand.hbm [shape: f32[16,1024], index: 7, kind: output, shape index: {}]
  %s8 = sld [smem:[#allocation0]]
  $region54: #{tpu_custom_call.1} parent=0
    _
  %s10 = ssub.s32 1, %s8
  %s11 = scalar_select 0, %s10, %s8
  $region1: #{tpu_custom_call.1} parent=0
    #allocation2 [shape = 'u8[8192]{0}', space=vmem, size = 0x2000, scoped, tag = 'input window, operand 0, single buffered']
    #allocation3 [shape = 's32[1]{0}', space=sflag, size = 0x4, scoped, tag = 'scoped memory for tpu_custom_call.1']
    #allocation4 [shape = 's32[1]{0}', space=sflag, size = 0x4, scoped, tag = 'scoped memory for tpu_custom_call.1']
    #allocation5 [shape = 'u8[8192]{0}', space=vmem, size = 0x2000, scoped, tag = 'input window, operand 1, single buffered']
    #allocation6 [shape = 's32[1]{0}', space=sflag, size = 0x4, scoped, tag = 'scoped memory for tpu_custom_call.1']
    #allocation7 [shape = 'u8[16384]{0}', space=vmem, size = 0x4000, scoped, tag = 'input window, operand 3, single buffered']
    #allocation8 [shape = 'u8[131072]{0}', space=vmem, size = 0x20000, scoped, tag = 'input window, operand 5, single buffered']
    #allocation9 [shape = 's32[1]{0}', space=sflag, size = 0x4, scoped, tag = 'scoped memory for tpu_custom_call.1']
    #allocation10 [shape = 'u8[65536]{0}', space=vmem, size = 0x10000, scoped, tag = 'output window, operand 0, single buffered']
    %12 = vsyncpa [#allocation3], 0
    %13 = vsyncpa [#allocation6], 0
    %14 = vsyncpa [#allocation9], 0
    %15 = vsyncpa [#allocation4], 0
    // Predicated region
    $region2: #{tpu_custom_call.1} parent=1 // pred_check
      _
    $region3: #{tpu_custom_call.1} parent=1 // pred_check_branch
      %17 = sbr.rel (0) target = $region5
    $region4: #{tpu_custom_call.1} parent=1 // pred_region
      %s19 = ssub.s32 256, 256
      %20 = vsyncadd [#allocation3], %s19
      %s21 = sshll.u32 [#allocation2], 4
      %s22 = int_to_ptr.vmem [resolvable:$true] %s21
      %27 = dma.hbm_to_vmem [thread:$0]  %s0, 256, %s22, [#allocation3], 128, 128, 8
    $region5: #{tpu_custom_call.1} parent=1 // pred_fallthru
      _
    // Predicated region
    $region6: #{tpu_custom_call.1} parent=1 // pred_check
      _
    $region7: #{tpu_custom_call.1} parent=1 // pred_check_branch
      %29 = sbr.rel (0) target = $region9
    $region8: #{tpu_custom_call.1} parent=1 // pred_region
      %s31 = ssub.s32 256, 256
      %32 = vsyncadd [#allocation6], %s31
      %s33 = sshll.u32 [#allocation5], 4
      %s34 = int_to_ptr.vmem [resolvable:$true] %s33
      %39 = dma.hbm_to_vmem [thread:$0]  %s1, 256, %s34, [#allocation6], 64, 64, 4
    $region9: #{tpu_custom_call.1} parent=1 // pred_fallthru
      _
    // Predicated region
    $region10: #{tpu_custom_call.1} parent=1 // pred_check
      _
    $region11: #{tpu_custom_call.1} parent=1 // pred_check_branch
      %41 = sbr.rel (0) target = $region13
    $region12: #{tpu_custom_call.1} parent=1 // pred_region
      _
    $region13: #{tpu_custom_call.1} parent=1 // pred_fallthru
      _
    // Predicated region
    $region14: #{tpu_custom_call.1} parent=1 // pred_check
      _
    $region15: #{tpu_custom_call.1} parent=1 // pred_check_branch
      %43 = sbr.rel (0) target = $region17
    $region16: #{tpu_custom_call.1} parent=1 // pred_region
      %s45 = ssub.s32 512, 512
      %46 = vsyncadd [#allocation6], %s45
      %s47 = sshll.u32 [#allocation7], 4
      %s48 = int_to_ptr.vmem [resolvable:$true] %s47
      %53 = dma.hbm_to_vmem [thread:$0]  %s3, 512, %s48, [#allocation6], 64, 64, 4
    $region17: #{tpu_custom_call.1} parent=1 // pred_fallthru
      _
    // Predicated region
    $region18: #{tpu_custom_call.1} parent=1 // pred_check
      _
    $region19: #{tpu_custom_call.1} parent=1 // pred_check_branch
      %55 = sbr.rel (0) target = $region21
    $region20: #{tpu_custom_call.1} parent=1 // pred_region
      _
    $region21: #{tpu_custom_call.1} parent=1 // pred_fallthru
      _
    // Predicated region
    $region22: #{tpu_custom_call.1} parent=1 // pred_check
      _
    $region23: #{tpu_custom_call.1} parent=1 // pred_check_branch
      %57 = sbr.rel (0) target = $region25
    $region24: #{tpu_custom_call.1} parent=1 // pred_region
      %s59 = ssub.s32 4096, 4096
      %60 = vsyncadd [#allocation9], %s59
      %s61 = sshll.u32 [#allocation8], 4
      %s62 = int_to_ptr.vmem [resolvable:$true] %s61
      %67 = dma.hbm_to_vmem [thread:$0]  %s5, 4096, %s62, [#allocation9], 512, 512, 32
    $region25: #{tpu_custom_call.1} parent=1 // pred_fallthru
      _
    // Predicated region
    $region26: #{tpu_custom_call.1} parent=1 // pred_check
      _
    $region27: #{tpu_custom_call.1} parent=1 // pred_check_branch
      %69 = sbr.rel (0) target = $region29
    $region28: #{tpu_custom_call.1} parent=1 // pred_region
      _
    $region29: #{tpu_custom_call.1} parent=1 // pred_fallthru
      _
    // Predicated region
    $region30: #{tpu_custom_call.1} parent=1 // pred_check
      _
    $region31: #{tpu_custom_call.1} parent=1 // pred_check_branch
      %71 = sbr.rel (0) target = $region33
    $region32: #{tpu_custom_call.1} parent=1 // pred_region
      %72 = dma.done [#allocation3], 256
    $region33: #{tpu_custom_call.1} parent=1 // pred_fallthru
      _
    // Predicated region
    $region34: #{tpu_custom_call.1} parent=1 // pred_check
      _
    $region35: #{tpu_custom_call.1} parent=1 // pred_check_branch
      %74 = sbr.rel (0) target = $region37
    $region36: #{tpu_custom_call.1} parent=1 // pred_region
      %75 = dma.done [#allocation6], 256
    $region37: #{tpu_custom_call.1} parent=1 // pred_fallthru
      _
    // Predicated region
    $region38: #{tpu_custom_call.1} parent=1 // pred_check
      _
    $region39: #{tpu_custom_call.1} parent=1 // pred_check_branch
      %77 = sbr.rel (0) target = $region41
    $region40: #{tpu_custom_call.1} parent=1 // pred_region
      %78 = dma.done [#allocation6], 512
    $region41: #{tpu_custom_call.1} parent=1 // pred_fallthru
      _
    // Predicated region
    $region42: #{tpu_custom_call.1} parent=1 // pred_check
      _
    $region43: #{tpu_custom_call.1} parent=1 // pred_check_branch
      %80 = sbr.rel (0) target = $region45
    $region44: #{tpu_custom_call.1} parent=1 // pred_region
      %81 = dma.done [#allocation9], 4096
    $region45: #{tpu_custom_call.1} parent=1 // pred_fallthru
      _
    %v83 = vld [vmem:[#allocation2] sm:$0xff]
    %v84 = vld [vmem:[#allocation2 + $0x8] sm:$0xff]
    %v85 = vpack.c.bf16 %v84, %v83
    %v86 = vld [vmem:[#allocation5] sm:$0xf]
    %v87 = vld [vmem:[#allocation5 + $0x4] sm:$0xf]
    %v88 = vld [vmem:[#allocation5 + $0x8] sm:$0xf]
    %v89 = vld [vmem:[#allocation5 + $0xc] sm:$0xf]
    %v90 = vld [vmem:[%s2] sm:$0x1]
    %v92 = vlaneseq
    %v93 = vshrl.u32 %v92, 7
    %v94 = vsub.s32 0, %v93
    %v95 = vrot.slane %v90, %v94
    %v101 = vunpack.c.l.b16 %v86
    %v102 = vunpack.c.l.b16 %v87
    %v103 = vunpack.c.l.b16 %v88
    %v104 = vunpack.c.l.b16 %v89
    %v105 = vpack.c.b16 %v102, %v101
    %v106 = vpack.c.b16 %v104, %v103
    %vm109 = vcmask 261120
    %v111 = vsel %vm109, %v85, 0
    %113 = vmatprep.subr.bf16.mxu0 0
    %114 = vmatpush1.bf16.msra.mxu0 %v105
    %115 = vmatprep.subr.bf16.mxu0 0
    %116 = vmatpush1.bf16.msra.mxu0 %v106
    %117 = vmatprep.subr.bf16.mxu0 0
    %118 = vmatpush1.bf16.msra.mxu0 0
    %119 = vmatprep.subr.bf16.mxu0 0
    %120 = vmatpush1.bf16.msra.mxu0 0
    %121 = vmatprep.subr.bf16.mxu0 0
    %122 = vmatpush1.bf16.msra.mxu0 0
    %123 = vmatprep.subr.bf16.mxu0 0
    %124 = vmatpush1.bf16.msra.mxu0 0
    %125 = vmatprep.subr.bf16.mxu0 0
    %126 = vmatpush1.bf16.msra.mxu0 0
    %127 = vmatprep.subr.bf16.mxu0 0
    %128 = vmatpush1.bf16.msra.mxu0 0
    %129 = vmatprep.subr.bf16.mxu0 0
    %130 = vmatpush1.bf16.msra.mxu0 0
    %131 = vmatprep.subr.bf16.mxu0 0
    %132 = vmatpush1.bf16.msra.mxu0 0
    %133 = vmatprep.subr.bf16.mxu0 0
    %134 = vmatpush1.bf16.msra.mxu0 0
    %135 = vmatprep.subr.bf16.mxu0 0
    %136 = vmatpush1.bf16.msra.mxu0 0
    %137 = vmatprep.subr.bf16.mxu0 0
    %138 = vmatpush1.bf16.msra.mxu0 0
    %139 = vmatprep.subr.bf16.mxu0 0
    %140 = vmatpush1.bf16.msra.mxu0 0
    %141 = vmatprep.subr.bf16.mxu0 0
    %142 = vmatpush1.bf16.msra.mxu0 0
    %143 = vmatprep.subr.bf16.mxu0 0
    %144 = vmatpush1.bf16.msra.mxu0 0
    %145 = vmatprep.mubr.bf16.mxu0 0
    %146 = vmatmul.mubr.bf16.gmra.mrb[0].mxu0 %v111
    %v147 = vpop.f32.mrb[0].mxu0
    %v148 = vadd.f32 %v95, %v147
    %v149 = vpop.f32.mrb[0].mxu0
    %v150 = vpop.f32.mrb[0].mxu0
    %v151 = vadd.f32 %v95, %v150
    %v152 = vpop.f32.mrb[0].mxu0
    %153 = vdwg.mxu0
    %v154 = vmax.f32 %v148, 0.0
    %v155 = vmax.f32 %v151, 0.0
    %v156 = vpack.c.bf16 %v155, %v154
    %v157 = vld [vmem:[#allocation7] sm:$0xf]
    %v158 = vld [vmem:[#allocation7 + $0x4] sm:$0xf]
    %v159 = vld [vmem:[#allocation7 + $0x8] sm:$0xf]
    %v160 = vld [vmem:[#allocation7 + $0xc] sm:$0xf]
    %v161 = vld [vmem:[#allocation7 + $0x10] sm:$0xf]
    %v162 = vld [vmem:[#allocation7 + $0x14] sm:$0xf]
    %v163 = vld [vmem:[#allocation7 + $0x18] sm:$0xf]
    %v164 = vld [vmem:[#allocation7 + $0x1c] sm:$0xf]
    %v165 = vld [vmem:[%s4] sm:$0x1]
    %v167 = vlaneseq
    %v168 = vshrl.u32 %v167, 7
    %v169 = vsub.s32 0, %v168
    %v170 = vrot.slane %v165, %v169
    %v180 = vunpack.c.l.b16 %v157
    %v181 = vunpack.c.l.b16 %v158
    %v182 = vunpack.c.l.b16 %v159
    %v183 = vunpack.c.l.b16 %v160
    %v184 = vunpack.c.l.b16 %v161
    %v185 = vunpack.c.l.b16 %v162
    %v186 = vunpack.c.l.b16 %v163
    %v187 = vunpack.c.l.b16 %v164
    %v188 = vpack.c.b16 %v181, %v180
    %v189 = vpack.c.b16 %v183, %v182
    %v190 = vpack.c.b16 %v185, %v184
    %v191 = vpack.c.b16 %v187, %v186
    %vm196 = vcmask 523264
    %v198 = vsel %vm196, %v156, 0
    %200 = vmatprep.subr.bf16.mxu0 0
    %201 = vmatpush1.bf16.msra.mxu0 %v188
    %202 = vmatprep.subr.bf16.mxu0 0
    %203 = vmatpush1.bf16.msra.mxu0 %v189
    %204 = vmatprep.subr.bf16.mxu0 0
    %205 = vmatpush1.bf16.msra.mxu0 %v190
    %206 = vmatprep.subr.bf16.mxu0 0
    %207 = vmatpush1.bf16.msra.mxu0 %v191
    %208 = vmatprep.subr.bf16.mxu0 0
    %209 = vmatpush1.bf16.msra.mxu0 0
    %210 = vmatprep.subr.bf16.mxu0 0
    %211 = vmatpush1.bf16.msra.mxu0 0
    %212 = vmatprep.subr.bf16.mxu0 0
    %213 = vmatpush1.bf16.msra.mxu0 0
    %214 = vmatprep.subr.bf16.mxu0 0
    %215 = vmatpush1.bf16.msra.mxu0 0
    %216 = vmatprep.subr.bf16.mxu0 0
    %217 = vmatpush1.bf16.msra.mxu0 0
    %218 = vmatprep.subr.bf16.mxu0 0
    %219 = vmatpush1.bf16.msra.mxu0 0
    %220 = vmatprep.subr.bf16.mxu0 0
    %221 = vmatpush1.bf16.msra.mxu0 0
    %222 = vmatprep.subr.bf16.mxu0 0
    %223 = vmatpush1.bf16.msra.mxu0 0
    %224 = vmatprep.subr.bf16.mxu0 0
    %225 = vmatpush1.bf16.msra.mxu0 0
    %226 = vmatprep.subr.bf16.mxu0 0
    %227 = vmatpush1.bf16.msra.mxu0 0
    %228 = vmatprep.subr.bf16.mxu0 0
    %229 = vmatpush1.bf16.msra.mxu0 0
    %230 = vmatprep.subr.bf16.mxu0 0
    %231 = vmatpush1.bf16.msra.mxu0 0
    %232 = vmatprep.mubr.bf16.mxu0 0
    %233 = vmatmul.mubr.bf16.gmra.mrb[0].mxu0 %v198
    %v234 = vpop.f32.mrb[0].mxu0
    %v235 = vadd.f32 %v170, %v234
    %v236 = vpop.f32.mrb[0].mxu0
    %v237 = vpop.f32.mrb[0].mxu0
    %v238 = vadd.f32 %v170, %v237
    %v239 = vpop.f32.mrb[0].mxu0
    %240 = vdwg.mxu0
    %v241 = vmax.f32 %v235, 0.0
    %v242 = vmax.f32 %v238, 0.0
    %v243 = vpack.c.bf16 %v242, %v241
    %v244 = vld [vmem:[#allocation8] sm:$0xff]
    %v245 = vld [vmem:[#allocation8 + $0x8] sm:$0xff]
    %v246 = vld [vmem:[#allocation8 + $0x10] sm:$0xff]
    %v247 = vld [vmem:[#allocation8 + $0x18] sm:$0xff]
    %v248 = vld [vmem:[#allocation8 + $0x20] sm:$0xff]
    %v249 = vld [vmem:[#allocation8 + $0x28] sm:$0xff]
    %v250 = vld [vmem:[#allocation8 + $0x30] sm:$0xff]
    %v251 = vld [vmem:[#allocation8 + $0x38] sm:$0xff]
    %v252 = vld [vmem:[#allocation8 + $0x40] sm:$0xff]
    %v253 = vld [vmem:[#allocation8 + $0x48] sm:$0xff]
    %v254 = vld [vmem:[#allocation8 + $0x50] sm:$0xff]
    %v255 = vld [vmem:[#allocation8 + $0x58] sm:$0xff]
    %v256 = vld [vmem:[#allocation8 + $0x60] sm:$0xff]
    %v257 = vld [vmem:[#allocation8 + $0x68] sm:$0xff]
    %v258 = vld [vmem:[#allocation8 + $0x70] sm:$0xff]
    %v259 = vld [vmem:[#allocation8 + $0x78] sm:$0xff]
    %v260 = vld [vmem:[#allocation8 + $0x80] sm:$0xff]
    %v261 = vld [vmem:[#allocation8 + $0x88] sm:$0xff]
    %v262 = vld [vmem:[#allocation8 + $0x90] sm:$0xff]
    %v263 = vld [vmem:[#allocation8 + $0x98] sm:$0xff]
    %v264 = vld [vmem:[#allocation8 + $0xa0] sm:$0xff]
    %v265 = vld [vmem:[#allocation8 + $0xa8] sm:$0xff]
    %v266 = vld [vmem:[#allocation8 + $0xb0] sm:$0xff]
    %v267 = vld [vmem:[#allocation8 + $0xb8] sm:$0xff]
    %v268 = vld [vmem:[#allocation8 + $0xc0] sm:$0xff]
    %v269 = vld [vmem:[#allocation8 + $0xc8] sm:$0xff]
    %v270 = vld [vmem:[#allocation8 + $0xd0] sm:$0xff]
    %v271 = vld [vmem:[#allocation8 + $0xd8] sm:$0xff]
    %v272 = vld [vmem:[#allocation8 + $0xe0] sm:$0xff]
    %v273 = vld [vmem:[#allocation8 + $0xe8] sm:$0xff]
    %v274 = vld [vmem:[#allocation8 + $0xf0] sm:$0xff]
    %v275 = vld [vmem:[#allocation8 + $0xf8] sm:$0xff]
    %v276 = vld [vmem:[%s6] sm:$0xff]
    %v278 = vlaneseq
    %v279 = vshrl.u32 %v278, 7
    %v280 = vsub.s32 0, %v279
    %v281 = vrot.slane %v276, %v280
    %v282 = vlaneseq
    %v283 = vshrl.u32 %v282, 7
    %v284 = vsub.s32 1, %v283
    %v285 = vrot.slane %v276, %v284
    %v286 = vlaneseq
    %v287 = vshrl.u32 %v286, 7
    %v288 = vsub.s32 2, %v287
    %v289 = vrot.slane %v276, %v288
    %v290 = vlaneseq
    %v291 = vshrl.u32 %v290, 7
    %v292 = vsub.s32 3, %v291
    %v293 = vrot.slane %v276, %v292
    %v294 = vlaneseq
    %v295 = vshrl.u32 %v294, 7
    %v296 = vsub.s32 4, %v295
    %v297 = vrot.slane %v276, %v296
    %v298 = vlaneseq
    %v299 = vshrl.u32 %v298, 7
    %v300 = vsub.s32 5, %v299
    %v301 = vrot.slane %v276, %v300
    %v302 = vlaneseq
    %v303 = vshrl.u32 %v302, 7
    %v304 = vsub.s32 6, %v303
    %v305 = vrot.slane %v276, %v304
    %v306 = vlaneseq
    %v307 = vshrl.u32 %v306, 7
    %v308 = vsub.s32 7, %v307
    %v309 = vrot.slane %v276, %v308
    %v350 = vunpack.c.l.b16 %v244
    %v351 = vunpack.c.h.b16 %v244
    %v352 = vunpack.c.l.b16 %v245
    %v353 = vunpack.c.h.b16 %v245
    %v354 = vunpack.c.l.b16 %v246
    %v355 = vunpack.c.h.b16 %v246
    %v356 = vunpack.c.l.b16 %v247
    %v357 = vunpack.c.h.b16 %v247
    %v358 = vunpack.c.l.b16 %v248
    %v359 = vunpack.c.h.b16 %v248
    %v360 = vunpack.c.l.b16 %v249
    %v361 = vunpack.c.h.b16 %v249
    %v362 = vunpack.c.l.b16 %v250
    %v363 = vunpack.c.h.b16 %v250
    %v364 = vunpack.c.l.b16 %v251
    %v365 = vunpack.c.h.b16 %v251
    %v366 = vunpack.c.l.b16 %v252
    %v367 = vunpack.c.h.b16 %v252
    %v368 = vunpack.c.l.b16 %v253
    %v369 = vunpack.c.h.b16 %v253
    %v370 = vunpack.c.l.b16 %v254
    %v371 = vunpack.c.h.b16 %v254
    %v372 = vunpack.c.l.b16 %v255
    %v373 = vunpack.c.h.b16 %v255
    %v374 = vunpack.c.l.b16 %v256
    %v375 = vunpack.c.h.b16 %v256
    %v376 = vunpack.c.l.b16 %v257
    %v377 = vunpack.c.h.b16 %v257
    %v378 = vunpack.c.l.b16 %v258
    %v379 = vunpack.c.h.b16 %v258
    %v380 = vunpack.c.l.b16 %v259
    %v381 = vunpack.c.h.b16 %v259
    %v382 = vunpack.c.l.b16 %v260
    %v383 = vunpack.c.h.b16 %v260
    %v384 = vunpack.c.l.b16 %v261
    %v385 = vunpack.c.h.b16 %v261
    %v386 = vunpack.c.l.b16 %v262
    %v387 = vunpack.c.h.b16 %v262
    %v388 = vunpack.c.l.b16 %v263
    %v389 = vunpack.c.h.b16 %v263
    %v390 = vunpack.c.l.b16 %v264
    %v391 = vunpack.c.h.b16 %v264
    %v392 = vunpack.c.l.b16 %v265
    %v393 = vunpack.c.h.b16 %v265
    %v394 = vunpack.c.l.b16 %v266
    %v395 = vunpack.c.h.b16 %v266
    %v396 = vunpack.c.l.b16 %v267
    %v397 = vunpack.c.h.b16 %v267
    %v398 = vunpack.c.l.b16 %v268
    %v399 = vunpack.c.h.b16 %v268
    %v400 = vunpack.c.l.b16 %v269
    %v401 = vunpack.c.h.b16 %v269
    %v402 = vunpack.c.l.b16 %v270
    %v403 = vunpack.c.h.b16 %v270
    %v404 = vunpack.c.l.b16 %v271
    %v405 = vunpack.c.h.b16 %v271
    %v406 = vunpack.c.l.b16 %v272
    %v407 = vunpack.c.h.b16 %v272
    %v408 = vunpack.c.l.b16 %v273
    %v409 = vunpack.c.h.b16 %v273
    %v410 = vunpack.c.l.b16 %v274
    %v411 = vunpack.c.h.b16 %v274
    %v412 = vunpack.c.l.b16 %v275
    %v413 = vunpack.c.h.b16 %v275
    %v414 = vpack.c.b16 %v358, %v350
    %v415 = vpack.c.b16 %v359, %v351
    %v416 = vpack.c.b16 %v360, %v352
    %v417 = vpack.c.b16 %v361, %v353
    %v418 = vpack.c.b16 %v362, %v354
    %v419 = vpack.c.b16 %v363, %v355
    %v420 = vpack.c.b16 %v364, %v356
    %v421 = vpack.c.b16 %v365, %v357
    %v422 = vpack.c.b16 %v374, %v366
    %v423 = vpack.c.b16 %v375, %v367
    %v424 = vpack.c.b16 %v376, %v368
    %v425 = vpack.c.b16 %v377, %v369
    %v426 = vpack.c.b16 %v378, %v370
    %v427 = vpack.c.b16 %v379, %v371
    %v428 = vpack.c.b16 %v380, %v372
    %v429 = vpack.c.b16 %v381, %v373
    %v430 = vpack.c.b16 %v390, %v382
    %v431 = vpack.c.b16 %v391, %v383
    %v432 = vpack.c.b16 %v392, %v384
    %v433 = vpack.c.b16 %v393, %v385
    %v434 = vpack.c.b16 %v394, %v386
    %v435 = vpack.c.b16 %v395, %v387
    %v436 = vpack.c.b16 %v396, %v388
    %v437 = vpack.c.b16 %v397, %v389
    %v438 = vpack.c.b16 %v406, %v398
    %v439 = vpack.c.b16 %v407, %v399
    %v440 = vpack.c.b16 %v408, %v400
    %v441 = vpack.c.b16 %v409, %v401
    %v442 = vpack.c.b16 %v410, %v402
    %v443 = vpack.c.b16 %v411, %v403
    %v444 = vpack.c.b16 %v412, %v404
    %v445 = vpack.c.b16 %v413, %v405
    %v479 = vsel %vm196, %v243, 0
    %481 = vmatprep.subr.bf16.mxu0 %v415
    %482 = vmatpush1.bf16.msra.mxu0 %v414
    %483 = vmatprep.subr.bf16.mxu0 %v423
    %484 = vmatpush1.bf16.msra.mxu0 %v422
    %485 = vmatprep.subr.bf16.mxu0 %v431
    %486 = vmatpush1.bf16.msra.mxu0 %v430
    %487 = vmatprep.subr.bf16.mxu0 %v439
    %488 = vmatpush1.bf16.msra.mxu0 %v438
    %489 = vmatprep.subr.bf16.mxu0 0
    %490 = vmatpush1.bf16.msra.mxu0 0
    %491 = vmatprep.subr.bf16.mxu0 0
    %492 = vmatpush1.bf16.msra.mxu0 0
    %493 = vmatprep.subr.bf16.mxu0 0
    %494 = vmatpush1.bf16.msra.mxu0 0
    %495 = vmatprep.subr.bf16.mxu0 0
    %496 = vmatpush1.bf16.msra.mxu0 0
    %497 = vmatprep.subr.bf16.mxu0 0
    %498 = vmatpush1.bf16.msra.mxu0 0
    %499 = vmatprep.subr.bf16.mxu0 0
    %500 = vmatpush1.bf16.msra.mxu0 0
    %501 = vmatprep.subr.bf16.mxu0 0
    %502 = vmatpush1.bf16.msra.mxu0 0
    %503 = vmatprep.subr.bf16.mxu0 0
    %504 = vmatpush1.bf16.msra.mxu0 0
    %505 = vmatprep.subr.bf16.mxu0 0
    %506 = vmatpush1.bf16.msra.mxu0 0
    %507 = vmatprep.subr.bf16.mxu0 0
    %508 = vmatpush1.bf16.msra.mxu0 0
    %509 = vmatprep.subr.bf16.mxu0 0
    %510 = vmatpush1.bf16.msra.mxu0 0
    %511 = vmatprep.subr.bf16.mxu0 0
    %512 = vmatpush1.bf16.msra.mxu0 0
    %513 = vmatprep.mubr.bf16.mxu0 0
    %514 = vmatmul.mubr.bf16.gmra.mrb[0].mxu0 %v479
    %v515 = vpop.f32.mrb[0].mxu0
    %v516 = vadd.f32 %v281, %v515
    %v517 = vpop.f32.mrb[0].mxu0
    %v518 = vadd.f32 %v285, %v517
    %v519 = vpop.f32.mrb[0].mxu0
    %v520 = vadd.f32 %v281, %v519
    %v521 = vpop.f32.mrb[0].mxu0
    %v522 = vadd.f32 %v285, %v521
    %523 = vdwg.mxu0
    %524 = vmatprep.subr.bf16.mxu0 %v417
    %525 = vmatpush1.bf16.msra.mxu0 %v416
    %526 = vmatprep.subr.bf16.mxu0 %v425
    %527 = vmatpush1.bf16.msra.mxu0 %v424
    %528 = vmatprep.subr.bf16.mxu0 %v433
    %529 = vmatpush1.bf16.msra.mxu0 %v432
    %530 = vmatprep.subr.bf16.mxu0 %v441
    %531 = vmatpush1.bf16.msra.mxu0 %v440
    %532 = vmatprep.subr.bf16.mxu0 0
    %533 = vmatpush1.bf16.msra.mxu0 0
    %534 = vmatprep.subr.bf16.mxu0 0
    %535 = vmatpush1.bf16.msra.mxu0 0
    %536 = vmatprep.subr.bf16.mxu0 0
    %537 = vmatpush1.bf16.msra.mxu0 0
    %538 = vmatprep.subr.bf16.mxu0 0
    %539 = vmatpush1.bf16.msra.mxu0 0
    %540 = vmatprep.subr.bf16.mxu0 0
    %541 = vmatpush1.bf16.msra.mxu0 0
    %542 = vmatprep.subr.bf16.mxu0 0
    %543 = vmatpush1.bf16.msra.mxu0 0
    %544 = vmatprep.subr.bf16.mxu0 0
    %545 = vmatpush1.bf16.msra.mxu0 0
    %546 = vmatprep.subr.bf16.mxu0 0
    %547 = vmatpush1.bf16.msra.mxu0 0
    %548 = vmatprep.subr.bf16.mxu0 0
    %549 = vmatpush1.bf16.msra.mxu0 0
    %550 = vmatprep.subr.bf16.mxu0 0
    %551 = vmatpush1.bf16.msra.mxu0 0
    %552 = vmatprep.subr.bf16.mxu0 0
    %553 = vmatpush1.bf16.msra.mxu0 0
    %554 = vmatprep.subr.bf16.mxu0 0
    %555 = vmatpush1.bf16.msra.mxu0 0
    %556 = vmatprep.mubr.bf16.mxu0 0
    %557 = vmatmul.mubr.bf16.gmra.mrb[0].mxu0 %v479
    %v558 = vpop.f32.mrb[0].mxu0
    %v559 = vadd.f32 %v289, %v558
    %v560 = vpop.f32.mrb[0].mxu0
    %v561 = vadd.f32 %v293, %v560
    %v562 = vpop.f32.mrb[0].mxu0
    %v563 = vadd.f32 %v289, %v562
    %v564 = vpop.f32.mrb[0].mxu0
    %v565 = vadd.f32 %v293, %v564
    %566 = vdwg.mxu0
    %567 = vmatprep.subr.bf16.mxu0 %v419
    %568 = vmatpush1.bf16.msra.mxu0 %v418
    %569 = vmatprep.subr.bf16.mxu0 %v427
    %570 = vmatpush1.bf16.msra.mxu0 %v426
    %571 = vmatprep.subr.bf16.mxu0 %v435
    %572 = vmatpush1.bf16.msra.mxu0 %v434
    %573 = vmatprep.subr.bf16.mxu0 %v443
    %574 = vmatpush1.bf16.msra.mxu0 %v442
    %575 = vmatprep.subr.bf16.mxu0 0
    %576 = vmatpush1.bf16.msra.mxu0 0
    %577 = vmatprep.subr.bf16.mxu0 0
    %578 = vmatpush1.bf16.msra.mxu0 0
    %579 = vmatprep.subr.bf16.mxu0 0
    %580 = vmatpush1.bf16.msra.mxu0 0
    %581 = vmatprep.subr.bf16.mxu0 0
    %582 = vmatpush1.bf16.msra.mxu0 0
    %583 = vmatprep.subr.bf16.mxu0 0
    %584 = vmatpush1.bf16.msra.mxu0 0
    %585 = vmatprep.subr.bf16.mxu0 0
    %586 = vmatpush1.bf16.msra.mxu0 0
    %587 = vmatprep.subr.bf16.mxu0 0
    %588 = vmatpush1.bf16.msra.mxu0 0
    %589 = vmatprep.subr.bf16.mxu0 0
    %590 = vmatpush1.bf16.msra.mxu0 0
    %591 = vmatprep.subr.bf16.mxu0 0
    %592 = vmatpush1.bf16.msra.mxu0 0
    %593 = vmatprep.subr.bf16.mxu0 0
    %594 = vmatpush1.bf16.msra.mxu0 0
    %595 = vmatprep.subr.bf16.mxu0 0
    %596 = vmatpush1.bf16.msra.mxu0 0
    %597 = vmatprep.subr.bf16.mxu0 0
    %598 = vmatpush1.bf16.msra.mxu0 0
    %599 = vmatprep.mubr.bf16.mxu0 0
    %600 = vmatmul.mubr.bf16.gmra.mrb[0].mxu0 %v479
    %v601 = vpop.f32.mrb[0].mxu0
    %v602 = vadd.f32 %v297, %v601
    %v603 = vpop.f32.mrb[0].mxu0
    %v604 = vadd.f32 %v301, %v603
    %v605 = vpop.f32.mrb[0].mxu0
    %v606 = vadd.f32 %v297, %v605
    %v607 = vpop.f32.mrb[0].mxu0
    %v608 = vadd.f32 %v301, %v607
    %609 = vdwg.mxu0
    %610 = vmatprep.subr.bf16.mxu0 %v421
    %611 = vmatpush1.bf16.msra.mxu0 %v420
    %612 = vmatprep.subr.bf16.mxu0 %v429
    %613 = vmatpush1.bf16.msra.mxu0 %v428
    %614 = vmatprep.subr.bf16.mxu0 %v437
    %615 = vmatpush1.bf16.msra.mxu0 %v436
    %616 = vmatprep.subr.bf16.mxu0 %v445
    %617 = vmatpush1.bf16.msra.mxu0 %v444
    %618 = vmatprep.subr.bf16.mxu0 0
    %619 = vmatpush1.bf16.msra.mxu0 0
    %620 = vmatprep.subr.bf16.mxu0 0
    %621 = vmatpush1.bf16.msra.mxu0 0
    %622 = vmatprep.subr.bf16.mxu0 0
    %623 = vmatpush1.bf16.msra.mxu0 0
    %624 = vmatprep.subr.bf16.mxu0 0
    %625 = vmatpush1.bf16.msra.mxu0 0
    %626 = vmatprep.subr.bf16.mxu0 0
    %627 = vmatpush1.bf16.msra.mxu0 0
    %628 = vmatprep.subr.bf16.mxu0 0
    %629 = vmatpush1.bf16.msra.mxu0 0
    %630 = vmatprep.subr.bf16.mxu0 0
    %631 = vmatpush1.bf16.msra.mxu0 0
    %632 = vmatprep.subr.bf16.mxu0 0
    %633 = vmatpush1.bf16.msra.mxu0 0
    %634 = vmatprep.subr.bf16.mxu0 0
    %635 = vmatpush1.bf16.msra.mxu0 0
    %636 = vmatprep.subr.bf16.mxu0 0
    %637 = vmatpush1.bf16.msra.mxu0 0
    %638 = vmatprep.subr.bf16.mxu0 0
    %639 = vmatpush1.bf16.msra.mxu0 0
    %640 = vmatprep.subr.bf16.mxu0 0
    %641 = vmatpush1.bf16.msra.mxu0 0
    %642 = vmatprep.mubr.bf16.mxu0 0
    %643 = vmatmul.mubr.bf16.gmra.mrb[0].mxu0 %v479
    %v644 = vpop.f32.mrb[0].mxu0
    %v645 = vadd.f32 %v305, %v644
    %v646 = vpop.f32.mrb[0].mxu0
    %v647 = vadd.f32 %v309, %v646
    %v648 = vpop.f32.mrb[0].mxu0
    %v649 = vadd.f32 %v305, %v648
    %v650 = vpop.f32.mrb[0].mxu0
    %v651 = vadd.f32 %v309, %v650
    %652 = vdwg.mxu0
    %653 = vst [vmem:[#allocation10] sm:$0xff] %v516
    %654 = vst [vmem:[#allocation10 + $0x8] sm:$0xff] %v518
    %655 = vst [vmem:[#allocation10 + $0x10] sm:$0xff] %v559
    %656 = vst [vmem:[#allocation10 + $0x18] sm:$0xff] %v561
    %657 = vst [vmem:[#allocation10 + $0x20] sm:$0xff] %v602
    %658 = vst [vmem:[#allocation10 + $0x28] sm:$0xff] %v604
    %659 = vst [vmem:[#allocation10 + $0x30] sm:$0xff] %v645
    %660 = vst [vmem:[#allocation10 + $0x38] sm:$0xff] %v647
    %661 = vst [vmem:[#allocation10 + $0x40] sm:$0xff] %v520
    %662 = vst [vmem:[#allocation10 + $0x48] sm:$0xff] %v522
    %663 = vst [vmem:[#allocation10 + $0x50] sm:$0xff] %v563
    %664 = vst [vmem:[#allocation10 + $0x58] sm:$0xff] %v565
    %665 = vst [vmem:[#allocation10 + $0x60] sm:$0xff] %v606
    %666 = vst [vmem:[#allocation10 + $0x68] sm:$0xff] %v608
    %667 = vst [vmem:[#allocation10 + $0x70] sm:$0xff] %v649
    %668 = vst [vmem:[#allocation10 + $0x78] sm:$0xff] %v651
    // Predicated region
    $region46: #{tpu_custom_call.1} parent=1 // pred_check
      _
    $region47: #{tpu_custom_call.1} parent=1 // pred_check_branch
      %670 = sbr.rel (0) target = $region49
    $region48: #{tpu_custom_call.1} parent=1 // pred_region
      %s672 = ssub.s32 2048, 2048
      %673 = vsyncadd [#allocation4], %s672
      %s674 = sshll.u32 [#allocation10], 4
      %s675 = int_to_ptr.vmem [resolvable:$true] %s674
      %680 = dma.vmem_to_hbm [thread:$0]  %s675, 2048, %s7, [#allocation4], 1024, 1024, 64
    $region49: #{tpu_custom_call.1} parent=1 // pred_fallthru
      _
    // Predicated region
    $region50: #{tpu_custom_call.1} parent=1 // pred_check
      _
    $region51: #{tpu_custom_call.1} parent=1 // pred_check_branch
      %682 = sbr.rel (0) target = $region53
    $region52: #{tpu_custom_call.1} parent=1 // pred_region
      %683 = dma.done [#allocation4], 2048
    $region53: #{tpu_custom_call.1} parent=1 // pred_fallthru
      _
    %684 = vsyncpa [#allocation3], 1
    %685 = vsyncpa [#allocation6], 1
    %686 = vsyncpa [#allocation9], 1
    %687 = vsyncpa [#allocation4], 1

</llo_original>
